<compile_context>
chip_gen: v7x
topology: tpu7x:2x2x1
jax: 0.10.0
libtpu: 0.0.40
codegen_flags: <defaults>
</compile_context>

<pallas_src>
import math

import jax
import jax.numpy as jnp
import numpy as np
from jax import lax
from jax.experimental import pallas as pl
from jax.experimental.pallas import tpu as pltpu


def lstm_kernel(qlen_ref, emb_ref, wih_ref, whh_ref, b_ref, out_ref, xproj_sc):
    TB, E = emb_ref.shape
    B, H = out_ref.shape
    T = TB // B

    # Hoisted out of the recurrence:
    #   Dropout(p=0.0) is identity; tanh over the whole [T*B, E] slab,
    #   then the input projection as one big MXU matmul with bias folded in.
    x_all = jnp.tanh(emb_ref[...])                                    # [T*B, E]
    xproj_sc[...] = (
        jnp.dot(x_all, wih_ref[...], preferred_element_type=jnp.float32)
        + b_ref[...])                                                 # [T*B, 4H]

    qlen = qlen_ref[...]                                              # [B, 1]
    lane = lax.broadcasted_iota(jnp.int32, (B, 4 * H), 1)
    is_g = (lane >= 2 * H) & (lane < 3 * H)                           # tanh-gate lanes

    def step(t, carry):
        h, c = carry
        row = pl.multiple_of(t * B, B)
        gates = xproj_sc[pl.ds(row, B), :] + jnp.dot(
            h, whh_ref[...], preferred_element_type=jnp.float32)      # [B, 4H]

        # Two full-vreg EUP pushes (sigmoid + tanh) instead of four sub-vreg ones.
        act = jnp.where(is_g, jnp.tanh(gates), jax.nn.sigmoid(gates))
        i_g = act[:, 0 * H:1 * H]
        f_g = act[:, 1 * H:2 * H]
        g_g = act[:, 2 * H:3 * H]
        o_g = act[:, 3 * H:4 * H]

        c_new = f_g * c + i_g * g_g
        h_new = o_g * jnp.tanh(c_new)

        # pack_padded_sequence semantics: only advance state while t < q_len[b].
        mask = t < qlen                                               # [B, 1]
        return jnp.where(mask, h_new, h), jnp.where(mask, c_new, c)

    h0 = jnp.zeros((B, H), jnp.float32)
    c0 = jnp.zeros((B, H), jnp.float32)
    _, c_fin = lax.fori_loop(0, T, step, (h0, c0), unroll=True)
    out_ref[...] = c_fin                                              # final cell state c


@jax.jit
def text_processor_forward(q, q_len, emb_w, w_ih, w_hh, b_ih, b_hh):
    B, T = q.shape
    E = emb_w.shape[1]
    H = w_hh.shape[1]                                # w_hh: [4H, H]

    # Glue (plain JAX): embedding gather + layout plumbing.
    emb = emb_w[q]                                   # [B, T, E]
    emb_flat = jnp.transpose(emb, (1, 0, 2)).reshape(T * B, E)   # time-major rows
    wih_t = w_ih.T                                   # [E, 4H]
    whh_t = w_hh.T                                   # [H, 4H]
    bias = (b_ih + b_hh).reshape(1, 4 * H)           # [1, 4H]
    qlen = q_len.reshape(B, 1).astype(jnp.int32)     # [B, 1]

    return pl.pallas_call(
        lstm_kernel,
        out_shape=jax.ShapeDtypeStruct((B, H), jnp.float32),
        grid_spec=pltpu.PrefetchScalarGridSpec(
            num_scalar_prefetch=0,
            grid=(1,),                               # single invocation; loop in-kernel
            in_specs=[
                pl.BlockSpec((B, 1), lambda i: (0, 0)),           # q_len
                pl.BlockSpec((T * B, E), lambda i: (0, 0)),       # embedded slab
                pl.BlockSpec((E, 4 * H), lambda i: (0, 0)),       # W_ih^T
                pl.BlockSpec((H, 4 * H), lambda i: (0, 0)),       # W_hh^T
                pl.BlockSpec((1, 4 * H), lambda i: (0, 0)),       # bias
            ],
            out_specs=pl.BlockSpec((B, H), lambda i: (0, 0)),
            scratch_shapes=[
                pltpu.VMEM((T * B, 4 * H), jnp.float32),          # hoisted x-projection
            ],
        ),
        compiler_params=pltpu.CompilerParams(
            dimension_semantics=("arbitrary",)),
    )(qlen, emb_flat, wih_t, whh_t, bias)


def reference_forward(q, q_len, emb_w, w_ih, w_hh, b_ih, b_hh):
    """Pure-JAX reference of the PyTorch forward (self-check)."""
    B, T = q.shape
    H = w_hh.shape[1]
    x = jnp.tanh(emb_w[q])                           # [B, T, E]

    def step(carry, t):
        h, c = carry
        xt = x[:, t, :]
        gates = xt @ w_ih.T + h @ w_hh.T + b_ih + b_hh
        i_g = jax.nn.sigmoid(gates[:, 0:H])
        f_g = jax.nn.sigmoid(gates[:, H:2 * H])
        g_g = jnp.tanh(gates[:, 2 * H:3 * H])
        o_g = jax.nn.sigmoid(gates[:, 3 * H:4 * H])
        c_new = f_g * c + i_g * g_g
        h_new = o_g * jnp.tanh(c_new)
        mask = (t < q_len)[:, None]
        return (jnp.where(mask, h_new, h), jnp.where(mask, c_new, c)), None

    init = (jnp.zeros((B, H), jnp.float32), jnp.zeros((B, H), jnp.float32))
    (h, c), _ = jax.lax.scan(step, init, jnp.arange(T))
    return c


def xavier_uniform(key, shape):
    fan_out, fan_in = shape
    bound = math.sqrt(6.0 / (fan_in + fan_out))
    return jax.random.uniform(key, shape, jnp.float32, -bound, bound)


if __name__ == "__main__":
    # Small shapes consistent with the module.
    V, E, H = 32, 32, 32          # embedding_tokens, embedding_features, lstm_features
    B, T = 8, 8                   # batch, (max) sequence length

    key = jax.random.PRNGKey(0)
    k_emb, k_ih, k_hh, k_q = jax.random.split(key, 4)

    # Parameters (deterministic, per the module's __init__ shapes / init).
    emb_w = xavier_uniform(k_emb, (V, E))
    w_ih = jnp.concatenate(
        [xavier_uniform(k, (H, E)) for k in jax.random.split(k_ih, 4)], axis=0)  # [4H, E]
    w_hh = jnp.concatenate(
        [xavier_uniform(k, (H, H)) for k in jax.random.split(k_hh, 4)], axis=0)  # [4H, H]
    b_ih = jnp.zeros((4 * H,), jnp.float32)
    b_hh = jnp.zeros((4 * H,), jnp.float32)

    # Inputs: token ids (0 = padding) and lengths sorted descending
    # (pack_padded_sequence default expects sorted lengths).
    q_len = jnp.array([8, 7, 6, 5, 4, 3, 3, 2], dtype=jnp.int32)
    tokens = jax.random.randint(k_q, (B, T), 1, V, dtype=jnp.int32)
    pad_mask = jnp.arange(T)[None, :] < q_len[:, None]
    q = jnp.where(pad_mask, tokens, 0)

    out = text_processor_forward(q, q_len, emb_w, w_ih, w_hh, b_ih, b_hh)
    out = jax.block_until_ready(out)

    ref = reference_forward(q, q_len, emb_w, w_ih, w_hh, b_ih, b_hh)
    np.testing.assert_allclose(np.asarray(out), np.asarray(ref), rtol=2e-3, atol=2e-3)

    assert out.shape == (B, H)
    print("KERNEL_OK")
</pallas_src>

<mosaic_0001>
module attributes {stable_mosaic.version = 11 : i64} {
  func.func @lstm_kernel(%arg0: i32, %arg1: memref<8x1xi32, #tpu.memory_space<vmem>>, %arg2: memref<64x32xf32, #tpu.memory_space<vmem>>, %arg3: memref<32x128xf32, #tpu.memory_space<vmem>>, %arg4: memref<32x128xf32, #tpu.memory_space<vmem>>, %arg5: memref<1x128xf32, #tpu.memory_space<vmem>>, %arg6: memref<8x32xf32, #tpu.memory_space<vmem>>, %arg7: memref<64x128xf32, #tpu.memory_space<vmem>>) attributes {dimension_semantics = [#tpu.dimension_semantics<arbitrary>], iteration_bounds = array<i64: 1>, scalar_prefetch = 0 : i64, scratch_operands = 1 : i64, tpu.core_type = #tpu.core_type<tc>, window_params = [{pipeline_mode = #tpu.pipeline_mode<synchronous>, transform_indices = @transform_0, window_bounds = array<i64: 8, 1>}, {pipeline_mode = #tpu.pipeline_mode<synchronous>, transform_indices = @transform_1, window_bounds = array<i64: 64, 32>}, {pipeline_mode = #tpu.pipeline_mode<synchronous>, transform_indices = @transform_2, window_bounds = array<i64: 32, 128>}, {pipeline_mode = #tpu.pipeline_mode<synchronous>, transform_indices = @transform_3, window_bounds = array<i64: 32, 128>}, {pipeline_mode = #tpu.pipeline_mode<synchronous>, transform_indices = @transform_4, window_bounds = array<i64: 1, 128>}, {pipeline_mode = #tpu.pipeline_mode<synchronous>, transform_indices = @transform_5, window_bounds = array<i64: 8, 32>}]} {
    %c0 = arith.constant 0 : index
    %c0_0 = arith.constant 0 : index
    %0 = vector.load %arg2[%c0, %c0_0] : memref<64x32xf32, #tpu.memory_space<vmem>>, vector<64x32xf32>
    %1 = math.tanh %0 : vector<64x32xf32>
    %c0_1 = arith.constant 0 : index
    %c0_2 = arith.constant 0 : index
    %2 = vector.load %arg3[%c0_1, %c0_2] : memref<32x128xf32, #tpu.memory_space<vmem>>, vector<32x128xf32>
    %cst = arith.constant dense<0.000000e+00> : vector<64x128xf32>
    %3 = tpu.matmul %1, %2, %cst {dimension_numbers = #tpu.dot_dimension_numbers<[1], [0], [0], [1], [0, 0, 1, 1], [], []>} : vector<64x32xf32>, vector<32x128xf32>, vector<64x128xf32> -> vector<64x128xf32>
    %c0_3 = arith.constant 0 : index
    %c0_4 = arith.constant 0 : index
    %4 = vector.load %arg5[%c0_3, %c0_4] : memref<1x128xf32, #tpu.memory_space<vmem>>, vector<1x128xf32>
    %5 = vector.broadcast %4 : vector<1x128xf32> to vector<64x128xf32>
    %6 = arith.addf %3, %5 : vector<64x128xf32>
    %c0_5 = arith.constant 0 : index
    %c0_6 = arith.constant 0 : index
    %7 = vector.load %arg7[%c0_5, %c0_6] : memref<64x128xf32, #tpu.memory_space<vmem>>, vector<64x128xf32>
    tpu.vector_store %arg7[%c0_5, %c0_6], %6 {strides = array<i32>} : memref<64x128xf32, #tpu.memory_space<vmem>>, vector<64x128xf32>,
    %c0_7 = arith.constant 0 : index
    %c0_8 = arith.constant 0 : index
    %8 = vector.load %arg1[%c0_7, %c0_8] : memref<8x1xi32, #tpu.memory_space<vmem>>, vector<8x1xi32>
    %9 = tpu.iota {dimensions = array<i32: 1>} : vector<8x128xi32>
    %c64_i32 = arith.constant 64 : i32
    %10 = vector.broadcast %c64_i32 : i32 to vector<8x128xi32>
    %11 = arith.cmpi sge, %9, %10 : vector<8x128xi32>
    %c96_i32 = arith.constant 96 : i32
    %12 = vector.broadcast %c96_i32 : i32 to vector<8x128xi32>
    %13 = arith.cmpi slt, %9, %12 : vector<8x128xi32>
    %14 = arith.andi %11, %13 : vector<8x128xi1>
    %cst_9 = arith.constant 0.000000e+00 : f32
    %15 = vector.broadcast %cst_9 : f32 to vector<8x32xf32>
    %cst_10 = arith.constant 0.000000e+00 : f32
    %16 = vector.broadcast %cst_10 : f32 to vector<8x32xf32>
    %c0_i32 = arith.constant 0 : i32
    %c8_i32 = arith.constant 8 : i32
    %17 = arith.muli %c0_i32, %c8_i32 : i32
    %18 = tpu.assume_multiple %17, 8 : i32
    %19 = arith.index_cast %18 : i32 to index
    %c0_11 = arith.constant 0 : index
    %20 = vector.load %arg7[%19, %c0_11] : memref<64x128xf32, #tpu.memory_space<vmem>>, vector<8x128xf32>
    %c0_12 = arith.constant 0 : index
    %c0_13 = arith.constant 0 : index
    %21 = vector.load %arg4[%c0_12, %c0_13] : memref<32x128xf32, #tpu.memory_space<vmem>>, vector<32x128xf32>
    %cst_14 = arith.constant dense<0.000000e+00> : vector<8x128xf32>
    %22 = tpu.matmul %15, %21, %cst_14 {dimension_numbers = #tpu.dot_dimension_numbers<[1], [0], [0], [1], [0, 0, 1, 1], [], []>} : vector<8x32xf32>, vector<32x128xf32>, vector<8x128xf32> -> vector<8x128xf32>
    %23 = arith.addf %20, %22 : vector<8x128xf32>
    %24 = math.tanh %23 : vector<8x128xf32>
    %25 = arith.negf %23 : vector<8x128xf32>
    %26 = math.exp %25 : vector<8x128xf32>
    %cst_15 = arith.constant 1.000000e+00 : f32
    %27 = vector.broadcast %cst_15 : f32 to vector<8x128xf32>
    %28 = arith.addf %27, %26 : vector<8x128xf32>
    %29 = arith.divf %27, %28 : vector<8x128xf32>
    %30 = arith.select %14, %24, %29 : vector<8x128xi1>, vector<8x128xf32>
    %31 = vector.extract_strided_slice %30 {offsets = [0, 0], sizes = [8, 32], strides = [1, 1]} : vector<8x128xf32> to vector<8x32xf32>
    %32 = vector.extract_strided_slice %30 {offsets = [0, 32], sizes = [8, 32], strides = [1, 1]} : vector<8x128xf32> to vector<8x32xf32>
    %33 = vector.extract_strided_slice %30 {offsets = [0, 64], sizes = [8, 32], strides = [1, 1]} : vector<8x128xf32> to vector<8x32xf32>
    %34 = vector.extract_strided_slice %30 {offsets = [0, 96], sizes = [8, 32], strides = [1, 1]} : vector<8x128xf32> to vector<8x32xf32>
    %35 = arith.mulf %32, %16 : vector<8x32xf32>
    %36 = arith.mulf %31, %33 : vector<8x32xf32>
    %37 = arith.addf %35, %36 : vector<8x32xf32>
    %38 = math.tanh %37 : vector<8x32xf32>
    %39 = arith.mulf %34, %38 : vector<8x32xf32>
    %40 = vector.broadcast %c0_i32 : i32 to vector<8x1xi32>
    %41 = arith.cmpi slt, %40, %8 : vector<8x1xi32>
    %42 = vector.shape_cast %41 : vector<8x1xi1> to vector<8x1xi1>
    %43 = vector.broadcast %42 : vector<8x1xi1> to vector<8x32xi1>
    %44 = arith.select %43, %39, %15 : vector<8x32xi1>, vector<8x32xf32>
    %45 = vector.shape_cast %41 : vector<8x1xi1> to vector<8x1xi1>
    %46 = vector.broadcast %45 : vector<8x1xi1> to vector<8x32xi1>
    %47 = arith.select %46, %37, %16 : vector<8x32xi1>, vector<8x32xf32>
    %c1_i32 = arith.constant 1 : i32
    %c8_i32_16 = arith.constant 8 : i32
    %48 = arith.muli %c1_i32, %c8_i32_16 : i32
    %49 = tpu.assume_multiple %48, 8 : i32
    %50 = arith.index_cast %49 : i32 to index
    %c0_17 = arith.constant 0 : index
    %51 = vector.load %arg7[%50, %c0_17] : memref<64x128xf32, #tpu.memory_space<vmem>>, vector<8x128xf32>
    %c0_18 = arith.constant 0 : index
    %c0_19 = arith.constant 0 : index
    %52 = vector.load %arg4[%c0_18, %c0_19] : memref<32x128xf32, #tpu.memory_space<vmem>>, vector<32x128xf32>
    %cst_20 = arith.constant dense<0.000000e+00> : vector<8x128xf32>
    %53 = tpu.matmul %44, %52, %cst_20 {dimension_numbers = #tpu.dot_dimension_numbers<[1], [0], [0], [1], [0, 0, 1, 1], [], []>} : vector<8x32xf32>, vector<32x128xf32>, vector<8x128xf32> -> vector<8x128xf32>
    %54 = arith.addf %51, %53 : vector<8x128xf32>
    %55 = math.tanh %54 : vector<8x128xf32>
    %56 = arith.negf %54 : vector<8x128xf32>
    %57 = math.exp %56 : vector<8x128xf32>
    %cst_21 = arith.constant 1.000000e+00 : f32
    %58 = vector.broadcast %cst_21 : f32 to vector<8x128xf32>
    %59 = arith.addf %58, %57 : vector<8x128xf32>
    %60 = arith.divf %58, %59 : vector<8x128xf32>
    %61 = arith.select %14, %55, %60 : vector<8x128xi1>, vector<8x128xf32>
    %62 = vector.extract_strided_slice %61 {offsets = [0, 0], sizes = [8, 32], strides = [1, 1]} : vector<8x128xf32> to vector<8x32xf32>
    %63 = vector.extract_strided_slice %61 {offsets = [0, 32], sizes = [8, 32], strides = [1, 1]} : vector<8x128xf32> to vector<8x32xf32>
    %64 = vector.extract_strided_slice %61 {offsets = [0, 64], sizes = [8, 32], strides = [1, 1]} : vector<8x128xf32> to vector<8x32xf32>
    %65 = vector.extract_strided_slice %61 {offsets = [0, 96], sizes = [8, 32], strides = [1, 1]} : vector<8x128xf32> to vector<8x32xf32>
    %66 = arith.mulf %63, %47 : vector<8x32xf32>
    %67 = arith.mulf %62, %64 : vector<8x32xf32>
    %68 = arith.addf %66, %67 : vector<8x32xf32>
    %69 = math.tanh %68 : vector<8x32xf32>
    %70 = arith.mulf %65, %69 : vector<8x32xf32>
    %71 = vector.broadcast %c1_i32 : i32 to vector<8x1xi32>
    %72 = arith.cmpi slt, %71, %8 : vector<8x1xi32>
    %73 = vector.shape_cast %72 : vector<8x1xi1> to vector<8x1xi1>
    %74 = vector.broadcast %73 : vector<8x1xi1> to vector<8x32xi1>
    %75 = arith.select %74, %70, %44 : vector<8x32xi1>, vector<8x32xf32>
    %76 = vector.shape_cast %72 : vector<8x1xi1> to vector<8x1xi1>
    %77 = vector.broadcast %76 : vector<8x1xi1> to vector<8x32xi1>
    %78 = arith.select %77, %68, %47 : vector<8x32xi1>, vector<8x32xf32>
    %c2_i32 = arith.constant 2 : i32
    %c8_i32_22 = arith.constant 8 : i32
    %79 = arith.muli %c2_i32, %c8_i32_22 : i32
    %80 = tpu.assume_multiple %79, 8 : i32
    %81 = arith.index_cast %80 : i32 to index
    %c0_23 = arith.constant 0 : index
    %82 = vector.load %arg7[%81, %c0_23] : memref<64x128xf32, #tpu.memory_space<vmem>>, vector<8x128xf32>
    %c0_24 = arith.constant 0 : index
    %c0_25 = arith.constant 0 : index
    %83 = vector.load %arg4[%c0_24, %c0_25] : memref<32x128xf32, #tpu.memory_space<vmem>>, vector<32x128xf32>
    %cst_26 = arith.constant dense<0.000000e+00> : vector<8x128xf32>
    %84 = tpu.matmul %75, %83, %cst_26 {dimension_numbers = #tpu.dot_dimension_numbers<[1], [0], [0], [1], [0, 0, 1, 1], [], []>} : vector<8x32xf32>, vector<32x128xf32>, vector<8x128xf32> -> vector<8x128xf32>
    %85 = arith.addf %82, %84 : vector<8x128xf32>
    %86 = math.tanh %85 : vector<8x128xf32>
    %87 = arith.negf %85 : vector<8x128xf32>
    %88 = math.exp %87 : vector<8x128xf32>
    %cst_27 = arith.constant 1.000000e+00 : f32
    %89 = vector.broadcast %cst_27 : f32 to vector<8x128xf32>
    %90 = arith.addf %89, %88 : vector<8x128xf32>
    %91 = arith.divf %89, %90 : vector<8x128xf32>
    %92 = arith.select %14, %86, %91 : vector<8x128xi1>, vector<8x128xf32>
    %93 = vector.extract_strided_slice %92 {offsets = [0, 0], sizes = [8, 32], strides = [1, 1]} : vector<8x128xf32> to vector<8x32xf32>
    %94 = vector.extract_strided_slice %92 {offsets = [0, 32], sizes = [8, 32], strides = [1, 1]} : vector<8x128xf32> to vector<8x32xf32>
    %95 = vector.extract_strided_slice %92 {offsets = [0, 64], sizes = [8, 32], strides = [1, 1]} : vector<8x128xf32> to vector<8x32xf32>
    %96 = vector.extract_strided_slice %92 {offsets = [0, 96], sizes = [8, 32], strides = [1, 1]} : vector<8x128xf32> to vector<8x32xf32>
    %97 = arith.mulf %94, %78 : vector<8x32xf32>
    %98 = arith.mulf %93, %95 : vector<8x32xf32>
    %99 = arith.addf %97, %98 : vector<8x32xf32>
    %100 = math.tanh %99 : vector<8x32xf32>
    %101 = arith.mulf %96, %100 : vector<8x32xf32>
    %102 = vector.broadcast %c2_i32 : i32 to vector<8x1xi32>
    %103 = arith.cmpi slt, %102, %8 : vector<8x1xi32>
    %104 = vector.shape_cast %103 : vector<8x1xi1> to vector<8x1xi1>
    %105 = vector.broadcast %104 : vector<8x1xi1> to vector<8x32xi1>
    %106 = arith.select %105, %101, %75 : vector<8x32xi1>, vector<8x32xf32>
    %107 = vector.shape_cast %103 : vector<8x1xi1> to vector<8x1xi1>
    %108 = vector.broadcast %107 : vector<8x1xi1> to vector<8x32xi1>
    %109 = arith.select %108, %99, %78 : vector<8x32xi1>, vector<8x32xf32>
    %c3_i32 = arith.constant 3 : i32
    %c8_i32_28 = arith.constant 8 : i32
    %110 = arith.muli %c3_i32, %c8_i32_28 : i32
    %111 = tpu.assume_multiple %110, 8 : i32
    %112 = arith.index_cast %111 : i32 to index
    %c0_29 = arith.constant 0 : index
    %113 = vector.load %arg7[%112, %c0_29] : memref<64x128xf32, #tpu.memory_space<vmem>>, vector<8x128xf32>
    %c0_30 = arith.constant 0 : index
    %c0_31 = arith.constant 0 : index
    %114 = vector.load %arg4[%c0_30, %c0_31] : memref<32x128xf32, #tpu.memory_space<vmem>>, vector<32x128xf32>
    %cst_32 = arith.constant dense<0.000000e+00> : vector<8x128xf32>
    %115 = tpu.matmul %106, %114, %cst_32 {dimension_numbers = #tpu.dot_dimension_numbers<[1], [0], [0], [1], [0, 0, 1, 1], [], []>} : vector<8x32xf32>, vector<32x128xf32>, vector<8x128xf32> -> vector<8x128xf32>
    %116 = arith.addf %113, %115 : vector<8x128xf32>
    %117 = math.tanh %116 : vector<8x128xf32>
    %118 = arith.negf %116 : vector<8x128xf32>
    %119 = math.exp %118 : vector<8x128xf32>
    %cst_33 = arith.constant 1.000000e+00 : f32
    %120 = vector.broadcast %cst_33 : f32 to vector<8x128xf32>
    %121 = arith.addf %120, %119 : vector<8x128xf32>
    %122 = arith.divf %120, %121 : vector<8x128xf32>
    %123 = arith.select %14, %117, %122 : vector<8x128xi1>, vector<8x128xf32>
    %124 = vector.extract_strided_slice %123 {offsets = [0, 0], sizes = [8, 32], strides = [1, 1]} : vector<8x128xf32> to vector<8x32xf32>
    %125 = vector.extract_strided_slice %123 {offsets = [0, 32], sizes = [8, 32], strides = [1, 1]} : vector<8x128xf32> to vector<8x32xf32>
    %126 = vector.extract_strided_slice %123 {offsets = [0, 64], sizes = [8, 32], strides = [1, 1]} : vector<8x128xf32> to vector<8x32xf32>
    %127 = vector.extract_strided_slice %123 {offsets = [0, 96], sizes = [8, 32], strides = [1, 1]} : vector<8x128xf32> to vector<8x32xf32>
    %128 = arith.mulf %125, %109 : vector<8x32xf32>
    %129 = arith.mulf %124, %126 : vector<8x32xf32>
    %130 = arith.addf %128, %129 : vector<8x32xf32>
    %131 = math.tanh %130 : vector<8x32xf32>
    %132 = arith.mulf %127, %131 : vector<8x32xf32>
    %133 = vector.broadcast %c3_i32 : i32 to vector<8x1xi32>
    %134 = arith.cmpi slt, %133, %8 : vector<8x1xi32>
    %135 = vector.shape_cast %134 : vector<8x1xi1> to vector<8x1xi1>
    %136 = vector.broadcast %135 : vector<8x1xi1> to vector<8x32xi1>
    %137 = arith.select %136, %132, %106 : vector<8x32xi1>, vector<8x32xf32>
    %138 = vector.shape_cast %134 : vector<8x1xi1> to vector<8x1xi1>
    %139 = vector.broadcast %138 : vector<8x1xi1> to vector<8x32xi1>
    %140 = arith.select %139, %130, %109 : vector<8x32xi1>, vector<8x32xf32>
    %c4_i32 = arith.constant 4 : i32
    %c8_i32_34 = arith.constant 8 : i32
    %141 = arith.muli %c4_i32, %c8_i32_34 : i32
    %142 = tpu.assume_multiple %141, 8 : i32
    %143 = arith.index_cast %142 : i32 to index
    %c0_35 = arith.constant 0 : index
    %144 = vector.load %arg7[%143, %c0_35] : memref<64x128xf32, #tpu.memory_space<vmem>>, vector<8x128xf32>
    %c0_36 = arith.constant 0 : index
    %c0_37 = arith.constant 0 : index
    %145 = vector.load %arg4[%c0_36, %c0_37] : memref<32x128xf32, #tpu.memory_space<vmem>>, vector<32x128xf32>
    %cst_38 = arith.constant dense<0.000000e+00> : vector<8x128xf32>
    %146 = tpu.matmul %137, %145, %cst_38 {dimension_numbers = #tpu.dot_dimension_numbers<[1], [0], [0], [1], [0, 0, 1, 1], [], []>} : vector<8x32xf32>, vector<32x128xf32>, vector<8x128xf32> -> vector<8x128xf32>
    %147 = arith.addf %144, %146 : vector<8x128xf32>
    %148 = math.tanh %147 : vector<8x128xf32>
    %149 = arith.negf %147 : vector<8x128xf32>
    %150 = math.exp %149 : vector<8x128xf32>
    %cst_39 = arith.constant 1.000000e+00 : f32
    %151 = vector.broadcast %cst_39 : f32 to vector<8x128xf32>
    %152 = arith.addf %151, %150 : vector<8x128xf32>
    %153 = arith.divf %151, %152 : vector<8x128xf32>
    %154 = arith.select %14, %148, %153 : vector<8x128xi1>, vector<8x128xf32>
    %155 = vector.extract_strided_slice %154 {offsets = [0, 0], sizes = [8, 32], strides = [1, 1]} : vector<8x128xf32> to vector<8x32xf32>
    %156 = vector.extract_strided_slice %154 {offsets = [0, 32], sizes = [8, 32], strides = [1, 1]} : vector<8x128xf32> to vector<8x32xf32>
    %157 = vector.extract_strided_slice %154 {offsets = [0, 64], sizes = [8, 32], strides = [1, 1]} : vector<8x128xf32> to vector<8x32xf32>
    %158 = vector.extract_strided_slice %154 {offsets = [0, 96], sizes = [8, 32], strides = [1, 1]} : vector<8x128xf32> to vector<8x32xf32>
    %159 = arith.mulf %156, %140 : vector<8x32xf32>
    %160 = arith.mulf %155, %157 : vector<8x32xf32>
    %161 = arith.addf %159, %160 : vector<8x32xf32>
    %162 = math.tanh %161 : vector<8x32xf32>
    %163 = arith.mulf %158, %162 : vector<8x32xf32>
    %164 = vector.broadcast %c4_i32 : i32 to vector<8x1xi32>
    %165 = arith.cmpi slt, %164, %8 : vector<8x1xi32>
    %166 = vector.shape_cast %165 : vector<8x1xi1> to vector<8x1xi1>
    %167 = vector.broadcast %166 : vector<8x1xi1> to vector<8x32xi1>
    %168 = arith.select %167, %163, %137 : vector<8x32xi1>, vector<8x32xf32>
    %169 = vector.shape_cast %165 : vector<8x1xi1> to vector<8x1xi1>
    %170 = vector.broadcast %169 : vector<8x1xi1> to vector<8x32xi1>
    %171 = arith.select %170, %161, %140 : vector<8x32xi1>, vector<8x32xf32>
    %c5_i32 = arith.constant 5 : i32
    %c8_i32_40 = arith.constant 8 : i32
    %172 = arith.muli %c5_i32, %c8_i32_40 : i32
    %173 = tpu.assume_multiple %172, 8 : i32
    %174 = arith.index_cast %173 : i32 to index
    %c0_41 = arith.constant 0 : index
    %175 = vector.load %arg7[%174, %c0_41] : memref<64x128xf32, #tpu.memory_space<vmem>>, vector<8x128xf32>
    %c0_42 = arith.constant 0 : index
    %c0_43 = arith.constant 0 : index
    %176 = vector.load %arg4[%c0_42, %c0_43] : memref<32x128xf32, #tpu.memory_space<vmem>>, vector<32x128xf32>
    %cst_44 = arith.constant dense<0.000000e+00> : vector<8x128xf32>
    %177 = tpu.matmul %168, %176, %cst_44 {dimension_numbers = #tpu.dot_dimension_numbers<[1], [0], [0], [1], [0, 0, 1, 1], [], []>} : vector<8x32xf32>, vector<32x128xf32>, vector<8x128xf32> -> vector<8x128xf32>
    %178 = arith.addf %175, %177 : vector<8x128xf32>
    %179 = math.tanh %178 : vector<8x128xf32>
    %180 = arith.negf %178 : vector<8x128xf32>
    %181 = math.exp %180 : vector<8x128xf32>
    %cst_45 = arith.constant 1.000000e+00 : f32
    %182 = vector.broadcast %cst_45 : f32 to vector<8x128xf32>
    %183 = arith.addf %182, %181 : vector<8x128xf32>
    %184 = arith.divf %182, %183 : vector<8x128xf32>
    %185 = arith.select %14, %179, %184 : vector<8x128xi1>, vector<8x128xf32>
    %186 = vector.extract_strided_slice %185 {offsets = [0, 0], sizes = [8, 32], strides = [1, 1]} : vector<8x128xf32> to vector<8x32xf32>
    %187 = vector.extract_strided_slice %185 {offsets = [0, 32], sizes = [8, 32], strides = [1, 1]} : vector<8x128xf32> to vector<8x32xf32>
    %188 = vector.extract_strided_slice %185 {offsets = [0, 64], sizes = [8, 32], strides = [1, 1]} : vector<8x128xf32> to vector<8x32xf32>
    %189 = vector.extract_strided_slice %185 {offsets = [0, 96], sizes = [8, 32], strides = [1, 1]} : vector<8x128xf32> to vector<8x32xf32>
    %190 = arith.mulf %187, %171 : vector<8x32xf32>
    %191 = arith.mulf %186, %188 : vector<8x32xf32>
    %192 = arith.addf %190, %191 : vector<8x32xf32>
    %193 = math.tanh %192 : vector<8x32xf32>
    %194 = arith.mulf %189, %193 : vector<8x32xf32>
    %195 = vector.broadcast %c5_i32 : i32 to vector<8x1xi32>
    %196 = arith.cmpi slt, %195, %8 : vector<8x1xi32>
    %197 = vector.shape_cast %196 : vector<8x1xi1> to vector<8x1xi1>
    %198 = vector.broadcast %197 : vector<8x1xi1> to vector<8x32xi1>
    %199 = arith.select %198, %194, %168 : vector<8x32xi1>, vector<8x32xf32>
    %200 = vector.shape_cast %196 : vector<8x1xi1> to vector<8x1xi1>
    %201 = vector.broadcast %200 : vector<8x1xi1> to vector<8x32xi1>
    %202 = arith.select %201, %192, %171 : vector<8x32xi1>, vector<8x32xf32>
    %c6_i32 = arith.constant 6 : i32
    %c8_i32_46 = arith.constant 8 : i32
    %203 = arith.muli %c6_i32, %c8_i32_46 : i32
    %204 = tpu.assume_multiple %203, 8 : i32
    %205 = arith.index_cast %204 : i32 to index
    %c0_47 = arith.constant 0 : index
    %206 = vector.load %arg7[%205, %c0_47] : memref<64x128xf32, #tpu.memory_space<vmem>>, vector<8x128xf32>
    %c0_48 = arith.constant 0 : index
    %c0_49 = arith.constant 0 : index
    %207 = vector.load %arg4[%c0_48, %c0_49] : memref<32x128xf32, #tpu.memory_space<vmem>>, vector<32x128xf32>
    %cst_50 = arith.constant dense<0.000000e+00> : vector<8x128xf32>
    %208 = tpu.matmul %199, %207, %cst_50 {dimension_numbers = #tpu.dot_dimension_numbers<[1], [0], [0], [1], [0, 0, 1, 1], [], []>} : vector<8x32xf32>, vector<32x128xf32>, vector<8x128xf32> -> vector<8x128xf32>
    %209 = arith.addf %206, %208 : vector<8x128xf32>
    %210 = math.tanh %209 : vector<8x128xf32>
    %211 = arith.negf %209 : vector<8x128xf32>
    %212 = math.exp %211 : vector<8x128xf32>
    %cst_51 = arith.constant 1.000000e+00 : f32
    %213 = vector.broadcast %cst_51 : f32 to vector<8x128xf32>
    %214 = arith.addf %213, %212 : vector<8x128xf32>
    %215 = arith.divf %213, %214 : vector<8x128xf32>
    %216 = arith.select %14, %210, %215 : vector<8x128xi1>, vector<8x128xf32>
    %217 = vector.extract_strided_slice %216 {offsets = [0, 0], sizes = [8, 32], strides = [1, 1]} : vector<8x128xf32> to vector<8x32xf32>
    %218 = vector.extract_strided_slice %216 {offsets = [0, 32], sizes = [8, 32], strides = [1, 1]} : vector<8x128xf32> to vector<8x32xf32>
    %219 = vector.extract_strided_slice %216 {offsets = [0, 64], sizes = [8, 32], strides = [1, 1]} : vector<8x128xf32> to vector<8x32xf32>
    %220 = vector.extract_strided_slice %216 {offsets = [0, 96], sizes = [8, 32], strides = [1, 1]} : vector<8x128xf32> to vector<8x32xf32>
    %221 = arith.mulf %218, %202 : vector<8x32xf32>
    %222 = arith.mulf %217, %219 : vector<8x32xf32>
    %223 = arith.addf %221, %222 : vector<8x32xf32>
    %224 = math.tanh %223 : vector<8x32xf32>
    %225 = arith.mulf %220, %224 : vector<8x32xf32>
    %226 = vector.broadcast %c6_i32 : i32 to vector<8x1xi32>
    %227 = arith.cmpi slt, %226, %8 : vector<8x1xi32>
    %228 = vector.shape_cast %227 : vector<8x1xi1> to vector<8x1xi1>
    %229 = vector.broadcast %228 : vector<8x1xi1> to vector<8x32xi1>
    %230 = arith.select %229, %225, %199 : vector<8x32xi1>, vector<8x32xf32>
    %231 = vector.shape_cast %227 : vector<8x1xi1> to vector<8x1xi1>
    %232 = vector.broadcast %231 : vector<8x1xi1> to vector<8x32xi1>
    %233 = arith.select %232, %223, %202 : vector<8x32xi1>, vector<8x32xf32>
    %c7_i32 = arith.constant 7 : i32
    %c8_i32_52 = arith.constant 8 : i32
    %234 = arith.muli %c7_i32, %c8_i32_52 : i32
    %235 = tpu.assume_multiple %234, 8 : i32
    %236 = arith.index_cast %235 : i32 to index
    %c0_53 = arith.constant 0 : index
    %237 = vector.load %arg7[%236, %c0_53] : memref<64x128xf32, #tpu.memory_space<vmem>>, vector<8x128xf32>
    %c0_54 = arith.constant 0 : index
    %c0_55 = arith.constant 0 : index
    %238 = vector.load %arg4[%c0_54, %c0_55] : memref<32x128xf32, #tpu.memory_space<vmem>>, vector<32x128xf32>
    %cst_56 = arith.constant dense<0.000000e+00> : vector<8x128xf32>
    %239 = tpu.matmul %230, %238, %cst_56 {dimension_numbers = #tpu.dot_dimension_numbers<[1], [0], [0], [1], [0, 0, 1, 1], [], []>} : vector<8x32xf32>, vector<32x128xf32>, vector<8x128xf32> -> vector<8x128xf32>
    %240 = arith.addf %237, %239 : vector<8x128xf32>
    %241 = math.tanh %240 : vector<8x128xf32>
    %242 = arith.negf %240 : vector<8x128xf32>
    %243 = math.exp %242 : vector<8x128xf32>
    %cst_57 = arith.constant 1.000000e+00 : f32
    %244 = vector.broadcast %cst_57 : f32 to vector<8x128xf32>
    %245 = arith.addf %244, %243 : vector<8x128xf32>
    %246 = arith.divf %244, %245 : vector<8x128xf32>
    %247 = arith.select %14, %241, %246 : vector<8x128xi1>, vector<8x128xf32>
    %248 = vector.extract_strided_slice %247 {offsets = [0, 0], sizes = [8, 32], strides = [1, 1]} : vector<8x128xf32> to vector<8x32xf32>
    %249 = vector.extract_strided_slice %247 {offsets = [0, 32], sizes = [8, 32], strides = [1, 1]} : vector<8x128xf32> to vector<8x32xf32>
    %250 = vector.extract_strided_slice %247 {offsets = [0, 64], sizes = [8, 32], strides = [1, 1]} : vector<8x128xf32> to vector<8x32xf32>
    %251 = vector.extract_strided_slice %247 {offsets = [0, 96], sizes = [8, 32], strides = [1, 1]} : vector<8x128xf32> to vector<8x32xf32>
    %252 = arith.mulf %249, %233 : vector<8x32xf32>
    %253 = arith.mulf %248, %250 : vector<8x32xf32>
    %254 = arith.addf %252, %253 : vector<8x32xf32>
    %255 = math.tanh %254 : vector<8x32xf32>
    %256 = arith.mulf %251, %255 : vector<8x32xf32>
    %257 = vector.broadcast %c7_i32 : i32 to vector<8x1xi32>
    %258 = arith.cmpi slt, %257, %8 : vector<8x1xi32>
    %259 = vector.shape_cast %258 : vector<8x1xi1> to vector<8x1xi1>
    %260 = vector.broadcast %259 : vector<8x1xi1> to vector<8x32xi1>
    %261 = arith.select %260, %256, %230 : vector<8x32xi1>, vector<8x32xf32>
    %262 = vector.shape_cast %258 : vector<8x1xi1> to vector<8x1xi1>
    %263 = vector.broadcast %262 : vector<8x1xi1> to vector<8x32xi1>
    %264 = arith.select %263, %254, %233 : vector<8x32xi1>, vector<8x32xf32>
    %c8_i32_58 = arith.constant 8 : i32
    %c0_59 = arith.constant 0 : index
    %c0_60 = arith.constant 0 : index
    %265 = vector.load %arg6[%c0_59, %c0_60] : memref<8x32xf32, #tpu.memory_space<vmem>>, vector<8x32xf32>
    tpu.vector_store %arg6[%c0_59, %c0_60], %264 {strides = array<i32>} : memref<8x32xf32, #tpu.memory_space<vmem>>, vector<8x32xf32>,
    return
  }
  func.func @transform_0(%arg0: i32) -> (i32, i32) {
    %c0_i32 = arith.constant 0 : i32
    %c0_i32_0 = arith.constant 0 : i32
    %c0_i32_1 = arith.constant 0 : i32
    return %c0_i32, %c0_i32_0 : i32, i32
  }
  func.func @transform_1(%arg0: i32) -> (i32, i32) {
    %c0_i32 = arith.constant 0 : i32
    %c0_i32_0 = arith.constant 0 : i32
    %c0_i32_1 = arith.constant 0 : i32
    return %c0_i32, %c0_i32_0 : i32, i32
  }
  func.func @transform_2(%arg0: i32) -> (i32, i32) {
    %c0_i32 = arith.constant 0 : i32
    %c0_i32_0 = arith.constant 0 : i32
    %c0_i32_1 = arith.constant 0 : i32
    return %c0_i32, %c0_i32_0 : i32, i32
  }
  func.func @transform_3(%arg0: i32) -> (i32, i32) {
    %c0_i32 = arith.constant 0 : i32
    %c0_i32_0 = arith.constant 0 : i32
    %c0_i32_1 = arith.constant 0 : i32
    return %c0_i32, %c0_i32_0 : i32, i32
  }
  func.func @transform_4(%arg0: i32) -> (i32, i32) {
    %c0_i32 = arith.constant 0 : i32
    %c0_i32_0 = arith.constant 0 : i32
    %c0_i32_1 = arith.constant 0 : i32
    return %c0_i32, %c0_i32_0 : i32, i32
  }
  func.func @transform_5(%arg0: i32) -> (i32, i32) {
    %c0_i32 = arith.constant 0 : i32
    %c0_i32_0 = arith.constant 0 : i32
    %c0_i32_1 = arith.constant 0 : i32
    return %c0_i32, %c0_i32_0 : i32, i32
  }
}

</mosaic_0001>

<llo_original>
// kernel: text_processor_forward.1
$region0: #{text_processor_forward.1}
  #allocation0 [shape = 'u32[]', space=smem, size = 0x4, offset = 0x4, fixed_abs, tag = 'smem constant byte address 0x4 - core index']
  #allocation1 [shape = 'u32[144,128]{1,0:T(1,128)}', space=vmem, size = 0x12000, scoped, tag = 'internal scratch']
  #allocation2 [shape = 'f32[64,128]{1,0:T(8,128)}', space=vmem, size = 0x8000, scoped, tag = 'scratch operand']
  %s0 = inlined_call_operand.vmem [shape: s32[8,1], index: 0, kind: input, shape index: {}]
  %s1 = inlined_call_operand.vmem [shape: f32[64,32], index: 1, kind: input, shape index: {}]
  %s2 = inlined_call_operand.vmem [shape: f32[32,128], index: 2, kind: input, shape index: {}]
  %s3 = inlined_call_operand.vmem [shape: f32[32,128], index: 3, kind: input, shape index: {}]
  %s4 = inlined_call_operand.vmem [shape: f32[1,128], index: 4, kind: input, shape index: {}]
  %s5 = inlined_call_operand.hbm [shape: f32[8,32], index: 5, kind: output, shape index: {}]
  %s6 = sld [smem:[#allocation0]]
  $region30: #{text_processor_forward.1} parent=0
    _
  %s8 = ssub.s32 1, %s6
  %s9 = scalar_select 0, %s8, %s6
  $region1: #{text_processor_forward.1} parent=0
    #allocation3 [shape = 'u8[4096]{0}', space=vmem, size = 0x1000, scoped, tag = 'output window, operand 0, single buffered']
    #allocation4 [shape = 's32[1]{0}', space=sflag, size = 0x4, scoped, tag = 'scoped memory for text_processor_forward.1']
    %10 = vsyncpa [#allocation4], 0
    // Predicated region
    $region2: #{text_processor_forward.1} parent=1 // pred_check
      _
    $region3: #{text_processor_forward.1} parent=1 // pred_check_branch
      %12 = sbr.rel (0) target = $region5
    $region4: #{text_processor_forward.1} parent=1 // pred_region
      _
    $region5: #{text_processor_forward.1} parent=1 // pred_fallthru
      _
    // Predicated region
    $region6: #{text_processor_forward.1} parent=1 // pred_check
      _
    $region7: #{text_processor_forward.1} parent=1 // pred_check_branch
      %14 = sbr.rel (0) target = $region9
    $region8: #{text_processor_forward.1} parent=1 // pred_region
      _
    $region9: #{text_processor_forward.1} parent=1 // pred_fallthru
      _
    // Predicated region
    $region10: #{text_processor_forward.1} parent=1 // pred_check
      _
    $region11: #{text_processor_forward.1} parent=1 // pred_check_branch
      %16 = sbr.rel (0) target = $region13
    $region12: #{text_processor_forward.1} parent=1 // pred_region
      _
    $region13: #{text_processor_forward.1} parent=1 // pred_fallthru
      _
    // Predicated region
    $region14: #{text_processor_forward.1} parent=1 // pred_check
      _
    $region15: #{text_processor_forward.1} parent=1 // pred_check_branch
      %18 = sbr.rel (0) target = $region17
    $region16: #{text_processor_forward.1} parent=1 // pred_region
      _
    $region17: #{text_processor_forward.1} parent=1 // pred_fallthru
      _
    // Predicated region
    $region18: #{text_processor_forward.1} parent=1 // pred_check
      _
    $region19: #{text_processor_forward.1} parent=1 // pred_check_branch
      %20 = sbr.rel (0) target = $region21
    $region20: #{text_processor_forward.1} parent=1 // pred_region
      _
    $region21: #{text_processor_forward.1} parent=1 // pred_fallthru
      _
    %v21 = vld [vmem:[%s1] sm:$0xff]
    %v22 = vld [vmem:[%s1 + $0x8] sm:$0xff]
    %v23 = vld [vmem:[%s1 + $0x10] sm:$0xff]
    %v24 = vld [vmem:[%s1 + $0x18] sm:$0xff]
    %v25 = vld [vmem:[%s1 + $0x20] sm:$0xff]
    %v26 = vld [vmem:[%s1 + $0x28] sm:$0xff]
    %v27 = vld [vmem:[%s1 + $0x30] sm:$0xff]
    %v28 = vld [vmem:[%s1 + $0x38] sm:$0xff]
    %v29 = vtanh.pop %v21
    %v30 = vtanh.pop %v22
    %v31 = vtanh.pop %v23
    %v32 = vtanh.pop %v24
    %v33 = vtanh.pop %v25
    %v34 = vtanh.pop %v26
    %v35 = vtanh.pop %v27
    %v36 = vtanh.pop %v28
    %v37 = vld [vmem:[%s2] sm:$0xff]
    %v38 = vld [vmem:[%s2 + $0x8] sm:$0xff]
    %v39 = vld [vmem:[%s2 + $0x10] sm:$0xff]
    %v40 = vld [vmem:[%s2 + $0x18] sm:$0xff]
    %v41 = vld [vmem:[%s4] sm:$0x1]
    %v43 = vlaneseq
    %v44 = vshrl.u32 %v43, 7
    %v45 = vsub.s32 0, %v44
    %v46 = vrot.slane %v41, %v45
    %vm48 = vcmask 261120
    %v50 = vsel %vm48, %v29, 0
    %v53 = vsel %vm48, %v30, 0
    %v56 = vsel %vm48, %v31, 0
    %v59 = vsel %vm48, %v32, 0
    %v62 = vsel %vm48, %v33, 0
    %v65 = vsel %vm48, %v34, 0
    %v68 = vsel %vm48, %v35, 0
    %v71 = vsel %vm48, %v36, 0
    %73 = vmatprep.subr.mxu0 0.0
    %74 = vmatpush1.msra.mxu0 %v37
    %75 = vmatprep.subr.mxu0 0.0
    %76 = vmatpush1.msra.mxu0 %v38
    %77 = vmatprep.subr.mxu0 0.0
    %78 = vmatpush1.msra.mxu0 %v39
    %79 = vmatprep.subr.mxu0 0.0
    %80 = vmatpush1.msra.mxu0 %v40
    %81 = vmatprep.subr.mxu0 0.0
    %82 = vmatpush1.msra.mxu0 0.0
    %83 = vmatprep.subr.mxu0 0.0
    %84 = vmatpush1.msra.mxu0 0.0
    %85 = vmatprep.subr.mxu0 0.0
    %86 = vmatpush1.msra.mxu0 0.0
    %87 = vmatprep.subr.mxu0 0.0
    %88 = vmatpush1.msra.mxu0 0.0
    %89 = vmatprep.subr.mxu0 0.0
    %90 = vmatpush1.msra.mxu0 0.0
    %91 = vmatprep.subr.mxu0 0.0
    %92 = vmatpush1.msra.mxu0 0.0
    %93 = vmatprep.subr.mxu0 0.0
    %94 = vmatpush1.msra.mxu0 0.0
    %95 = vmatprep.subr.mxu0 0.0
    %96 = vmatpush1.msra.mxu0 0.0
    %97 = vmatprep.subr.mxu0 0.0
    %98 = vmatpush1.msra.mxu0 0.0
    %99 = vmatprep.subr.mxu0 0.0
    %100 = vmatpush1.msra.mxu0 0.0
    %101 = vmatprep.subr.mxu0 0.0
    %102 = vmatpush1.msra.mxu0 0.0
    %103 = vmatprep.subr.mxu0 0.0
    %104 = vmatpush1.msra.mxu0 0.0
    %105 = vmatprep.subr.mxu0 0.0
    %106 = vmatpush1.msra.mxu0 0.0
    %107 = vmatprep.subr.mxu0 0.0
    %108 = vmatpush1.msra.mxu0 0.0
    %109 = vmatprep.subr.mxu0 0.0
    %110 = vmatpush1.msra.mxu0 0.0
    %111 = vmatprep.subr.mxu0 0.0
    %112 = vmatpush1.msra.mxu0 0.0
    %113 = vmatprep.subr.mxu0 0.0
    %114 = vmatpush1.msra.mxu0 0.0
    %115 = vmatprep.subr.mxu0 0.0
    %116 = vmatpush1.msra.mxu0 0.0
    %117 = vmatprep.subr.mxu0 0.0
    %118 = vmatpush1.msra.mxu0 0.0
    %119 = vmatprep.subr.mxu0 0.0
    %120 = vmatpush1.msra.mxu0 0.0
    %121 = vmatprep.subr.mxu0 0.0
    %122 = vmatpush1.msra.mxu0 0.0
    %123 = vmatprep.subr.mxu0 0.0
    %124 = vmatpush1.msra.mxu0 0.0
    %125 = vmatprep.subr.mxu0 0.0
    %126 = vmatpush1.msra.mxu0 0.0
    %127 = vmatprep.subr.mxu0 0.0
    %128 = vmatpush1.msra.mxu0 0.0
    %129 = vmatprep.subr.mxu0 0.0
    %130 = vmatpush1.msra.mxu0 0.0
    %131 = vmatprep.subr.mxu0 0.0
    %132 = vmatpush1.msra.mxu0 0.0
    %133 = vmatprep.subr.mxu0 0.0
    %134 = vmatpush1.msra.mxu0 0.0
    %135 = vmatprep.subr.mxu0 0.0
    %136 = vmatpush1.msra.mxu0 0.0
    %137 = vmatprep.mubr.f32.mxu0 0.0
    %138 = vmatmul.mubr.f32.gmra.mrb[0].mxu0 %v50
    %v139 = vpop.f32.mrb[0].mxu0
    %v140 = vadd.f32 %v46, %v139
    %v141 = vpop.f32.mrb[0].mxu0
    %142 = vmatprep.mubr.f32.mxu0 0.0
    %143 = vmatmul.mubr.f32.gmra.mrb[0].mxu0 %v53
    %v144 = vpop.f32.mrb[0].mxu0
    %v145 = vadd.f32 %v46, %v144
    %v146 = vpop.f32.mrb[0].mxu0
    %147 = vmatprep.mubr.f32.mxu0 0.0
    %148 = vmatmul.mubr.f32.gmra.mrb[0].mxu0 %v56
    %v149 = vpop.f32.mrb[0].mxu0
    %v150 = vadd.f32 %v46, %v149
    %v151 = vpop.f32.mrb[0].mxu0
    %152 = vmatprep.mubr.f32.mxu0 0.0
    %153 = vmatmul.mubr.f32.gmra.mrb[0].mxu0 %v59
    %v154 = vpop.f32.mrb[0].mxu0
    %v155 = vadd.f32 %v46, %v154
    %v156 = vpop.f32.mrb[0].mxu0
    %157 = vmatprep.mubr.f32.mxu0 0.0
    %158 = vmatmul.mubr.f32.gmra.mrb[0].mxu0 %v62
    %v159 = vpop.f32.mrb[0].mxu0
    %v160 = vadd.f32 %v46, %v159
    %v161 = vpop.f32.mrb[0].mxu0
    %162 = vmatprep.mubr.f32.mxu0 0.0
    %163 = vmatmul.mubr.f32.gmra.mrb[0].mxu0 %v65
    %v164 = vpop.f32.mrb[0].mxu0
    %v165 = vadd.f32 %v46, %v164
    %v166 = vpop.f32.mrb[0].mxu0
    %167 = vmatprep.mubr.f32.mxu0 0.0
    %168 = vmatmul.mubr.f32.gmra.mrb[0].mxu0 %v68
    %v169 = vpop.f32.mrb[0].mxu0
    %v170 = vadd.f32 %v46, %v169
    %v171 = vpop.f32.mrb[0].mxu0
    %172 = vmatprep.mubr.f32.mxu0 0.0
    %173 = vmatmul.mubr.f32.gmra.mrb[0].mxu0 %v71
    %v174 = vpop.f32.mrb[0].mxu0
    %v175 = vadd.f32 %v46, %v174
    %v176 = vpop.f32.mrb[0].mxu0
    %177 = vdwg.mxu0
    %178 = vst [vmem:[#allocation2] sm:$0xff] %v140
    %179 = vst [vmem:[#allocation2 + $0x8] sm:$0xff] %v145
    %180 = vst [vmem:[#allocation2 + $0x10] sm:$0xff] %v150
    %181 = vst [vmem:[#allocation2 + $0x18] sm:$0xff] %v155
    %182 = vst [vmem:[#allocation2 + $0x20] sm:$0xff] %v160
    %183 = vst [vmem:[#allocation2 + $0x28] sm:$0xff] %v165
    %184 = vst [vmem:[#allocation2 + $0x30] sm:$0xff] %v170
    %185 = vst [vmem:[#allocation2 + $0x38] sm:$0xff] %v175
    %v186 = vld [vmem:[%s0] sm:$0xff]
    %v187 = vlaneseq
    %v188 = vand.u32 %v187, 127
    %vm189 = vcmp.ge.s32.totalorder %v188, 64
    %vm190 = vcmp.lt.s32.totalorder %v188, 96
    %vm191 = vmand %vm189, %vm190
    %v192 = vld [vmem:[#allocation2] sm:$0xff]
    %v193 = vld [vmem:[%s3] sm:$0xff]
    %v194 = vld [vmem:[%s3 + $0x8] sm:$0xff]
    %v195 = vld [vmem:[%s3 + $0x10] sm:$0xff]
    %v196 = vld [vmem:[%s3 + $0x18] sm:$0xff]
    %v198 = vsel %vm48, 0.0, 0
    %200 = vmatprep.subr.mxu0 0.0
    %201 = vmatpush1.msra.mxu0 %v193
    %202 = vmatprep.subr.mxu0 0.0
    %203 = vmatpush1.msra.mxu0 %v194
    %204 = vmatprep.subr.mxu0 0.0
    %205 = vmatpush1.msra.mxu0 %v195
    %206 = vmatprep.subr.mxu0 0.0
    %207 = vmatpush1.msra.mxu0 %v196
    %208 = vmatprep.subr.mxu0 0.0
    %209 = vmatpush1.msra.mxu0 0.0
    %210 = vmatprep.subr.mxu0 0.0
    %211 = vmatpush1.msra.mxu0 0.0
    %212 = vmatprep.subr.mxu0 0.0
    %213 = vmatpush1.msra.mxu0 0.0
    %214 = vmatprep.subr.mxu0 0.0
    %215 = vmatpush1.msra.mxu0 0.0
    %216 = vmatprep.subr.mxu0 0.0
    %217 = vmatpush1.msra.mxu0 0.0
    %218 = vmatprep.subr.mxu0 0.0
    %219 = vmatpush1.msra.mxu0 0.0
    %220 = vmatprep.subr.mxu0 0.0
    %221 = vmatpush1.msra.mxu0 0.0
    %222 = vmatprep.subr.mxu0 0.0
    %223 = vmatpush1.msra.mxu0 0.0
    %224 = vmatprep.subr.mxu0 0.0
    %225 = vmatpush1.msra.mxu0 0.0
    %226 = vmatprep.subr.mxu0 0.0
    %227 = vmatpush1.msra.mxu0 0.0
    %228 = vmatprep.subr.mxu0 0.0
    %229 = vmatpush1.msra.mxu0 0.0
    %230 = vmatprep.subr.mxu0 0.0
    %231 = vmatpush1.msra.mxu0 0.0
    %232 = vmatprep.subr.mxu0 0.0
    %233 = vmatpush1.msra.mxu0 0.0
    %234 = vmatprep.subr.mxu0 0.0
    %235 = vmatpush1.msra.mxu0 0.0
    %236 = vmatprep.subr.mxu0 0.0
    %237 = vmatpush1.msra.mxu0 0.0
    %238 = vmatprep.subr.mxu0 0.0
    %239 = vmatpush1.msra.mxu0 0.0
    %240 = vmatprep.subr.mxu0 0.0
    %241 = vmatpush1.msra.mxu0 0.0
    %242 = vmatprep.subr.mxu0 0.0
    %243 = vmatpush1.msra.mxu0 0.0
    %244 = vmatprep.subr.mxu0 0.0
    %245 = vmatpush1.msra.mxu0 0.0
    %246 = vmatprep.subr.mxu0 0.0
    %247 = vmatpush1.msra.mxu0 0.0
    %248 = vmatprep.subr.mxu0 0.0
    %249 = vmatpush1.msra.mxu0 0.0
    %250 = vmatprep.subr.mxu0 0.0
    %251 = vmatpush1.msra.mxu0 0.0
    %252 = vmatprep.subr.mxu0 0.0
    %253 = vmatpush1.msra.mxu0 0.0
    %254 = vmatprep.subr.mxu0 0.0
    %255 = vmatpush1.msra.mxu0 0.0
    %256 = vmatprep.subr.mxu0 0.0
    %257 = vmatpush1.msra.mxu0 0.0
    %258 = vmatprep.subr.mxu0 0.0
    %259 = vmatpush1.msra.mxu0 0.0
    %260 = vmatprep.subr.mxu0 0.0
    %261 = vmatpush1.msra.mxu0 0.0
    %262 = vmatprep.subr.mxu0 0.0
    %263 = vmatpush1.msra.mxu0 0.0
    %264 = vmatprep.mubr.f32.mxu0 0.0
    %265 = vmatmul.mubr.f32.gmra.mrb[0].mxu0 %v198
    %v266 = vpop.f32.mrb[0].mxu0
    %v267 = vadd.f32 0.0, %v266
    %v268 = vpop.f32.mrb[0].mxu0
    %269 = vdwg.mxu0
    %v270 = vadd.f32 %v192, %v267
    %v271 = vtanh.pop %v270
    %v272 = vxor.u32 %v270, 2147483648
    %v273 = vmul.f32 %v272, 1.442695
    %v274 = vpow.pop %v273
    %v275 = vadd.f32 %v274, 1.0
    %v276 = vrcp.pop %v275
    %v277 = vmul.f32 1.0, %v276
    %v278 = vsel %vm191, %v271, %v277
    %v279 = vmul.f32 %v278, 0.0
    %281 = vrot.lane.b32.xlu0 %v278, 64
    %v282 = vpop.permute.xlu0 %281
    %v284 = vmul.f32 %v278, %v282
    %286 = vrot.lane.b32.xlu0 %v284, 32
    %v287 = vpop.permute.xlu0 %286
    %v289 = vadd.f32 %v279, %v287
    %v290 = vtanh.pop %v289
    %292 = vrot.lane.b32.xlu0 %v290, 64
    %v293 = vpop.permute.xlu0 %292
    %v295 = vmul.f32 %v278, %v293
    %vm296 = vcmp.gt.s32.totalorder %v186, 0
    %v297 = vsel %vm296, 1, 0
    %298 = vset.pattern.permute.xlu0 0
    %299 = vperm.xlu0 %298, %v297
    %v300 = vpop.permute.xlu0 %299
    %vm301 = vcmp.eq.s32.totalorder %v300, 1
    %v302 = vsel %vm301, %v295, 0.0
    %v303 = vsel %vm301, %v289, 0.0
    %s304 = scalar_lea.vmem [#allocation2], 8
    %v305 = vld [vmem:[%s304] sm:$0xff]
    %307 = vrot.lane.b32.xlu0 %v302, 32
    %v308 = vpop.permute.xlu0 %307
    %v309 = vsel %vm48, %v308, 0
    %311 = vmatprep.subr.mxu0 0.0
    %312 = vmatpush1.msra.mxu0 %v193
    %313 = vmatprep.subr.mxu0 0.0
    %314 = vmatpush1.msra.mxu0 %v194
    %315 = vmatprep.subr.mxu0 0.0
    %316 = vmatpush1.msra.mxu0 %v195
    %317 = vmatprep.subr.mxu0 0.0
    %318 = vmatpush1.msra.mxu0 %v196
    %319 = vmatprep.subr.mxu0 0.0
    %320 = vmatpush1.msra.mxu0 0.0
    %321 = vmatprep.subr.mxu0 0.0
    %322 = vmatpush1.msra.mxu0 0.0
    %323 = vmatprep.subr.mxu0 0.0
    %324 = vmatpush1.msra.mxu0 0.0
    %325 = vmatprep.subr.mxu0 0.0
    %326 = vmatpush1.msra.mxu0 0.0
    %327 = vmatprep.subr.mxu0 0.0
    %328 = vmatpush1.msra.mxu0 0.0
    %329 = vmatprep.subr.mxu0 0.0
    %330 = vmatpush1.msra.mxu0 0.0
    %331 = vmatprep.subr.mxu0 0.0
    %332 = vmatpush1.msra.mxu0 0.0
    %333 = vmatprep.subr.mxu0 0.0
    %334 = vmatpush1.msra.mxu0 0.0
    %335 = vmatprep.subr.mxu0 0.0
    %336 = vmatpush1.msra.mxu0 0.0
    %337 = vmatprep.subr.mxu0 0.0
    %338 = vmatpush1.msra.mxu0 0.0
    %339 = vmatprep.subr.mxu0 0.0
    %340 = vmatpush1.msra.mxu0 0.0
    %341 = vmatprep.subr.mxu0 0.0
    %342 = vmatpush1.msra.mxu0 0.0
    %343 = vmatprep.subr.mxu0 0.0
    %344 = vmatpush1.msra.mxu0 0.0
    %345 = vmatprep.subr.mxu0 0.0
    %346 = vmatpush1.msra.mxu0 0.0
    %347 = vmatprep.subr.mxu0 0.0
    %348 = vmatpush1.msra.mxu0 0.0
    %349 = vmatprep.subr.mxu0 0.0
    %350 = vmatpush1.msra.mxu0 0.0
    %351 = vmatprep.subr.mxu0 0.0
    %352 = vmatpush1.msra.mxu0 0.0
    %353 = vmatprep.subr.mxu0 0.0
    %354 = vmatpush1.msra.mxu0 0.0
    %355 = vmatprep.subr.mxu0 0.0
    %356 = vmatpush1.msra.mxu0 0.0
    %357 = vmatprep.subr.mxu0 0.0
    %358 = vmatpush1.msra.mxu0 0.0
    %359 = vmatprep.subr.mxu0 0.0
    %360 = vmatpush1.msra.mxu0 0.0
    %361 = vmatprep.subr.mxu0 0.0
    %362 = vmatpush1.msra.mxu0 0.0
    %363 = vmatprep.subr.mxu0 0.0
    %364 = vmatpush1.msra.mxu0 0.0
    %365 = vmatprep.subr.mxu0 0.0
    %366 = vmatpush1.msra.mxu0 0.0
    %367 = vmatprep.subr.mxu0 0.0
    %368 = vmatpush1.msra.mxu0 0.0
    %369 = vmatprep.subr.mxu0 0.0
    %370 = vmatpush1.msra.mxu0 0.0
    %371 = vmatprep.subr.mxu0 0.0
    %372 = vmatpush1.msra.mxu0 0.0
    %373 = vmatprep.subr.mxu0 0.0
    %374 = vmatpush1.msra.mxu0 0.0
    %375 = vmatprep.mubr.f32.mxu0 0.0
    %376 = vmatmul.mubr.f32.gmra.mrb[0].mxu0 %v309
    %v377 = vpop.f32.mrb[0].mxu0
    %v378 = vadd.f32 0.0, %v377
    %v379 = vpop.f32.mrb[0].mxu0
    %380 = vdwg.mxu0
    %v381 = vadd.f32 %v305, %v378
    %v382 = vtanh.pop %v381
    %v383 = vxor.u32 %v381, 2147483648
    %v384 = vmul.f32 %v383, 1.442695
    %v385 = vpow.pop %v384
    %v386 = vadd.f32 %v385, 1.0
    %v387 = vrcp.pop %v386
    %v388 = vmul.f32 1.0, %v387
    %v389 = vsel %vm191, %v382, %v388
    %v390 = vmul.f32 %v389, %v303
    %392 = vrot.lane.b32.xlu0 %v389, 64
    %v393 = vpop.permute.xlu0 %392
    %v395 = vmul.f32 %v389, %v393
    %397 = vrot.lane.b32.xlu0 %v395, 32
    %v398 = vpop.permute.xlu0 %397
    %v400 = vadd.f32 %v390, %v398
    %v401 = vtanh.pop %v400
    %403 = vrot.lane.b32.xlu0 %v401, 64
    %v404 = vpop.permute.xlu0 %403
    %v406 = vmul.f32 %v389, %v404
    %vm407 = vcmp.gt.s32.totalorder %v186, 1
    %v408 = vsel %vm407, 1, 0
    %409 = vset.pattern.permute.xlu0 0
    %410 = vperm.xlu0 %409, %v408
    %v411 = vpop.permute.xlu0 %410
    %vm412 = vcmp.eq.s32.totalorder %v411, 1
    %v413 = vsel %vm412, %v406, %v302
    %v414 = vsel %vm412, %v400, %v303
    %s415 = scalar_lea.vmem [#allocation2], 16
    %v416 = vld [vmem:[%s415] sm:$0xff]
    %418 = vrot.lane.b32.xlu0 %v413, 32
    %v419 = vpop.permute.xlu0 %418
    %v420 = vsel %vm48, %v419, 0
    %422 = vmatprep.subr.mxu0 0.0
    %423 = vmatpush1.msra.mxu0 %v193
    %424 = vmatprep.subr.mxu0 0.0
    %425 = vmatpush1.msra.mxu0 %v194
    %426 = vmatprep.subr.mxu0 0.0
    %427 = vmatpush1.msra.mxu0 %v195
    %428 = vmatprep.subr.mxu0 0.0
    %429 = vmatpush1.msra.mxu0 %v196
    %430 = vmatprep.subr.mxu0 0.0
    %431 = vmatpush1.msra.mxu0 0.0
    %432 = vmatprep.subr.mxu0 0.0
    %433 = vmatpush1.msra.mxu0 0.0
    %434 = vmatprep.subr.mxu0 0.0
    %435 = vmatpush1.msra.mxu0 0.0
    %436 = vmatprep.subr.mxu0 0.0
    %437 = vmatpush1.msra.mxu0 0.0
    %438 = vmatprep.subr.mxu0 0.0
    %439 = vmatpush1.msra.mxu0 0.0
    %440 = vmatprep.subr.mxu0 0.0
    %441 = vmatpush1.msra.mxu0 0.0
    %442 = vmatprep.subr.mxu0 0.0
    %443 = vmatpush1.msra.mxu0 0.0
    %444 = vmatprep.subr.mxu0 0.0
    %445 = vmatpush1.msra.mxu0 0.0
    %446 = vmatprep.subr.mxu0 0.0
    %447 = vmatpush1.msra.mxu0 0.0
    %448 = vmatprep.subr.mxu0 0.0
    %449 = vmatpush1.msra.mxu0 0.0
    %450 = vmatprep.subr.mxu0 0.0
    %451 = vmatpush1.msra.mxu0 0.0
    %452 = vmatprep.subr.mxu0 0.0
    %453 = vmatpush1.msra.mxu0 0.0
    %454 = vmatprep.subr.mxu0 0.0
    %455 = vmatpush1.msra.mxu0 0.0
    %456 = vmatprep.subr.mxu0 0.0
    %457 = vmatpush1.msra.mxu0 0.0
    %458 = vmatprep.subr.mxu0 0.0
    %459 = vmatpush1.msra.mxu0 0.0
    %460 = vmatprep.subr.mxu0 0.0
    %461 = vmatpush1.msra.mxu0 0.0
    %462 = vmatprep.subr.mxu0 0.0
    %463 = vmatpush1.msra.mxu0 0.0
    %464 = vmatprep.subr.mxu0 0.0
    %465 = vmatpush1.msra.mxu0 0.0
    %466 = vmatprep.subr.mxu0 0.0
    %467 = vmatpush1.msra.mxu0 0.0
    %468 = vmatprep.subr.mxu0 0.0
    %469 = vmatpush1.msra.mxu0 0.0
    %470 = vmatprep.subr.mxu0 0.0
    %471 = vmatpush1.msra.mxu0 0.0
    %472 = vmatprep.subr.mxu0 0.0
    %473 = vmatpush1.msra.mxu0 0.0
    %474 = vmatprep.subr.mxu0 0.0
    %475 = vmatpush1.msra.mxu0 0.0
    %476 = vmatprep.subr.mxu0 0.0
    %477 = vmatpush1.msra.mxu0 0.0
    %478 = vmatprep.subr.mxu0 0.0
    %479 = vmatpush1.msra.mxu0 0.0
    %480 = vmatprep.subr.mxu0 0.0
    %481 = vmatpush1.msra.mxu0 0.0
    %482 = vmatprep.subr.mxu0 0.0
    %483 = vmatpush1.msra.mxu0 0.0
    %484 = vmatprep.subr.mxu0 0.0
    %485 = vmatpush1.msra.mxu0 0.0
    %486 = vmatprep.mubr.f32.mxu0 0.0
    %487 = vmatmul.mubr.f32.gmra.mrb[0].mxu0 %v420
    %v488 = vpop.f32.mrb[0].mxu0
    %v489 = vadd.f32 0.0, %v488
    %v490 = vpop.f32.mrb[0].mxu0
    %491 = vdwg.mxu0
    %v492 = vadd.f32 %v416, %v489
    %v493 = vtanh.pop %v492
    %v494 = vxor.u32 %v492, 2147483648
    %v495 = vmul.f32 %v494, 1.442695
    %v496 = vpow.pop %v495
    %v497 = vadd.f32 %v496, 1.0
    %v498 = vrcp.pop %v497
    %v499 = vmul.f32 1.0, %v498
    %v500 = vsel %vm191, %v493, %v499
    %v501 = vmul.f32 %v500, %v414
    %503 = vrot.lane.b32.xlu0 %v500, 64
    %v504 = vpop.permute.xlu0 %503
    %v506 = vmul.f32 %v500, %v504
    %508 = vrot.lane.b32.xlu0 %v506, 32
    %v509 = vpop.permute.xlu0 %508
    %v511 = vadd.f32 %v501, %v509
    %v512 = vtanh.pop %v511
    %514 = vrot.lane.b32.xlu0 %v512, 64
    %v515 = vpop.permute.xlu0 %514
    %v517 = vmul.f32 %v500, %v515
    %vm518 = vcmp.gt.s32.totalorder %v186, 2
    %v519 = vsel %vm518, 1, 0
    %520 = vset.pattern.permute.xlu0 0
    %521 = vperm.xlu0 %520, %v519
    %v522 = vpop.permute.xlu0 %521
    %vm523 = vcmp.eq.s32.totalorder %v522, 1
    %v524 = vsel %vm523, %v517, %v413
    %v525 = vsel %vm523, %v511, %v414
    %s526 = scalar_lea.vmem [#allocation2], 24
    %v527 = vld [vmem:[%s526] sm:$0xff]
    %529 = vrot.lane.b32.xlu0 %v524, 32
    %v530 = vpop.permute.xlu0 %529
    %v531 = vsel %vm48, %v530, 0
    %533 = vmatprep.subr.mxu0 0.0
    %534 = vmatpush1.msra.mxu0 %v193
    %535 = vmatprep.subr.mxu0 0.0
    %536 = vmatpush1.msra.mxu0 %v194
    %537 = vmatprep.subr.mxu0 0.0
    %538 = vmatpush1.msra.mxu0 %v195
    %539 = vmatprep.subr.mxu0 0.0
    %540 = vmatpush1.msra.mxu0 %v196
    %541 = vmatprep.subr.mxu0 0.0
    %542 = vmatpush1.msra.mxu0 0.0
    %543 = vmatprep.subr.mxu0 0.0
    %544 = vmatpush1.msra.mxu0 0.0
    %545 = vmatprep.subr.mxu0 0.0
    %546 = vmatpush1.msra.mxu0 0.0
    %547 = vmatprep.subr.mxu0 0.0
    %548 = vmatpush1.msra.mxu0 0.0
    %549 = vmatprep.subr.mxu0 0.0
    %550 = vmatpush1.msra.mxu0 0.0
    %551 = vmatprep.subr.mxu0 0.0
    %552 = vmatpush1.msra.mxu0 0.0
    %553 = vmatprep.subr.mxu0 0.0
    %554 = vmatpush1.msra.mxu0 0.0
    %555 = vmatprep.subr.mxu0 0.0
    %556 = vmatpush1.msra.mxu0 0.0
    %557 = vmatprep.subr.mxu0 0.0
    %558 = vmatpush1.msra.mxu0 0.0
    %559 = vmatprep.subr.mxu0 0.0
    %560 = vmatpush1.msra.mxu0 0.0
    %561 = vmatprep.subr.mxu0 0.0
    %562 = vmatpush1.msra.mxu0 0.0
    %563 = vmatprep.subr.mxu0 0.0
    %564 = vmatpush1.msra.mxu0 0.0
    %565 = vmatprep.subr.mxu0 0.0
    %566 = vmatpush1.msra.mxu0 0.0
    %567 = vmatprep.subr.mxu0 0.0
    %568 = vmatpush1.msra.mxu0 0.0
    %569 = vmatprep.subr.mxu0 0.0
    %570 = vmatpush1.msra.mxu0 0.0
    %571 = vmatprep.subr.mxu0 0.0
    %572 = vmatpush1.msra.mxu0 0.0
    %573 = vmatprep.subr.mxu0 0.0
    %574 = vmatpush1.msra.mxu0 0.0
    %575 = vmatprep.subr.mxu0 0.0
    %576 = vmatpush1.msra.mxu0 0.0
    %577 = vmatprep.subr.mxu0 0.0
    %578 = vmatpush1.msra.mxu0 0.0
    %579 = vmatprep.subr.mxu0 0.0
    %580 = vmatpush1.msra.mxu0 0.0
    %581 = vmatprep.subr.mxu0 0.0
    %582 = vmatpush1.msra.mxu0 0.0
    %583 = vmatprep.subr.mxu0 0.0
    %584 = vmatpush1.msra.mxu0 0.0
    %585 = vmatprep.subr.mxu0 0.0
    %586 = vmatpush1.msra.mxu0 0.0
    %587 = vmatprep.subr.mxu0 0.0
    %588 = vmatpush1.msra.mxu0 0.0
    %589 = vmatprep.subr.mxu0 0.0
    %590 = vmatpush1.msra.mxu0 0.0
    %591 = vmatprep.subr.mxu0 0.0
    %592 = vmatpush1.msra.mxu0 0.0
    %593 = vmatprep.subr.mxu0 0.0
    %594 = vmatpush1.msra.mxu0 0.0
    %595 = vmatprep.subr.mxu0 0.0
    %596 = vmatpush1.msra.mxu0 0.0
    %597 = vmatprep.mubr.f32.mxu0 0.0
    %598 = vmatmul.mubr.f32.gmra.mrb[0].mxu0 %v531
    %v599 = vpop.f32.mrb[0].mxu0
    %v600 = vadd.f32 0.0, %v599
    %v601 = vpop.f32.mrb[0].mxu0
    %602 = vdwg.mxu0
    %v603 = vadd.f32 %v527, %v600
    %v604 = vtanh.pop %v603
    %v605 = vxor.u32 %v603, 2147483648
    %v606 = vmul.f32 %v605, 1.442695
    %v607 = vpow.pop %v606
    %v608 = vadd.f32 %v607, 1.0
    %v609 = vrcp.pop %v608
    %v610 = vmul.f32 1.0, %v609
    %v611 = vsel %vm191, %v604, %v610
    %v612 = vmul.f32 %v611, %v525
    %614 = vrot.lane.b32.xlu0 %v611, 64
    %v615 = vpop.permute.xlu0 %614
    %v617 = vmul.f32 %v611, %v615
    %619 = vrot.lane.b32.xlu0 %v617, 32
    %v620 = vpop.permute.xlu0 %619
    %v622 = vadd.f32 %v612, %v620
    %v623 = vtanh.pop %v622
    %625 = vrot.lane.b32.xlu0 %v623, 64
    %v626 = vpop.permute.xlu0 %625
    %v628 = vmul.f32 %v611, %v626
    %vm629 = vcmp.gt.s32.totalorder %v186, 3
    %v630 = vsel %vm629, 1, 0
    %631 = vset.pattern.permute.xlu0 0
    %632 = vperm.xlu0 %631, %v630
    %v633 = vpop.permute.xlu0 %632
    %vm634 = vcmp.eq.s32.totalorder %v633, 1
    %v635 = vsel %vm634, %v628, %v524
    %v636 = vsel %vm634, %v622, %v525
    %s637 = scalar_lea.vmem [#allocation2], 32
    %v638 = vld [vmem:[%s637] sm:$0xff]
    %640 = vrot.lane.b32.xlu0 %v635, 32
    %v641 = vpop.permute.xlu0 %640
    %v642 = vsel %vm48, %v641, 0
    %644 = vmatprep.subr.mxu0 0.0
    %645 = vmatpush1.msra.mxu0 %v193
    %646 = vmatprep.subr.mxu0 0.0
    %647 = vmatpush1.msra.mxu0 %v194
    %648 = vmatprep.subr.mxu0 0.0
    %649 = vmatpush1.msra.mxu0 %v195
    %650 = vmatprep.subr.mxu0 0.0
    %651 = vmatpush1.msra.mxu0 %v196
    %652 = vmatprep.subr.mxu0 0.0
    %653 = vmatpush1.msra.mxu0 0.0
    %654 = vmatprep.subr.mxu0 0.0
    %655 = vmatpush1.msra.mxu0 0.0
    %656 = vmatprep.subr.mxu0 0.0
    %657 = vmatpush1.msra.mxu0 0.0
    %658 = vmatprep.subr.mxu0 0.0
    %659 = vmatpush1.msra.mxu0 0.0
    %660 = vmatprep.subr.mxu0 0.0
    %661 = vmatpush1.msra.mxu0 0.0
    %662 = vmatprep.subr.mxu0 0.0
    %663 = vmatpush1.msra.mxu0 0.0
    %664 = vmatprep.subr.mxu0 0.0
    %665 = vmatpush1.msra.mxu0 0.0
    %666 = vmatprep.subr.mxu0 0.0
    %667 = vmatpush1.msra.mxu0 0.0
    %668 = vmatprep.subr.mxu0 0.0
    %669 = vmatpush1.msra.mxu0 0.0
    %670 = vmatprep.subr.mxu0 0.0
    %671 = vmatpush1.msra.mxu0 0.0
    %672 = vmatprep.subr.mxu0 0.0
    %673 = vmatpush1.msra.mxu0 0.0
    %674 = vmatprep.subr.mxu0 0.0
    %675 = vmatpush1.msra.mxu0 0.0
    %676 = vmatprep.subr.mxu0 0.0
    %677 = vmatpush1.msra.mxu0 0.0
    %678 = vmatprep.subr.mxu0 0.0
    %679 = vmatpush1.msra.mxu0 0.0
    %680 = vmatprep.subr.mxu0 0.0
    %681 = vmatpush1.msra.mxu0 0.0
    %682 = vmatprep.subr.mxu0 0.0
    %683 = vmatpush1.msra.mxu0 0.0
    %684 = vmatprep.subr.mxu0 0.0
    %685 = vmatpush1.msra.mxu0 0.0
    %686 = vmatprep.subr.mxu0 0.0
    %687 = vmatpush1.msra.mxu0 0.0
    %688 = vmatprep.subr.mxu0 0.0
    %689 = vmatpush1.msra.mxu0 0.0
    %690 = vmatprep.subr.mxu0 0.0
    %691 = vmatpush1.msra.mxu0 0.0
    %692 = vmatprep.subr.mxu0 0.0
    %693 = vmatpush1.msra.mxu0 0.0
    %694 = vmatprep.subr.mxu0 0.0
    %695 = vmatpush1.msra.mxu0 0.0
    %696 = vmatprep.subr.mxu0 0.0
    %697 = vmatpush1.msra.mxu0 0.0
    %698 = vmatprep.subr.mxu0 0.0
    %699 = vmatpush1.msra.mxu0 0.0
    %700 = vmatprep.subr.mxu0 0.0
    %701 = vmatpush1.msra.mxu0 0.0
    %702 = vmatprep.subr.mxu0 0.0
    %703 = vmatpush1.msra.mxu0 0.0
    %704 = vmatprep.subr.mxu0 0.0
    %705 = vmatpush1.msra.mxu0 0.0
    %706 = vmatprep.subr.mxu0 0.0
    %707 = vmatpush1.msra.mxu0 0.0
    %708 = vmatprep.mubr.f32.mxu0 0.0
    %709 = vmatmul.mubr.f32.gmra.mrb[0].mxu0 %v642
    %v710 = vpop.f32.mrb[0].mxu0
    %v711 = vadd.f32 0.0, %v710
    %v712 = vpop.f32.mrb[0].mxu0
    %713 = vdwg.mxu0
    %v714 = vadd.f32 %v638, %v711
    %v715 = vtanh.pop %v714
    %v716 = vxor.u32 %v714, 2147483648
    %v717 = vmul.f32 %v716, 1.442695
    %v718 = vpow.pop %v717
    %v719 = vadd.f32 %v718, 1.0
    %v720 = vrcp.pop %v719
    %v721 = vmul.f32 1.0, %v720
    %v722 = vsel %vm191, %v715, %v721
    %v723 = vmul.f32 %v722, %v636
    %725 = vrot.lane.b32.xlu0 %v722, 64
    %v726 = vpop.permute.xlu0 %725
    %v728 = vmul.f32 %v722, %v726
    %730 = vrot.lane.b32.xlu0 %v728, 32
    %v731 = vpop.permute.xlu0 %730
    %v733 = vadd.f32 %v723, %v731
    %v734 = vtanh.pop %v733
    %736 = vrot.lane.b32.xlu0 %v734, 64
    %v737 = vpop.permute.xlu0 %736
    %v739 = vmul.f32 %v722, %v737
    %vm740 = vcmp.gt.s32.totalorder %v186, 4
    %v741 = vsel %vm740, 1, 0
    %742 = vset.pattern.permute.xlu0 0
    %743 = vperm.xlu0 %742, %v741
    %v744 = vpop.permute.xlu0 %743
    %vm745 = vcmp.eq.s32.totalorder %v744, 1
    %v746 = vsel %vm745, %v739, %v635
    %v747 = vsel %vm745, %v733, %v636
    %s748 = scalar_lea.vmem [#allocation2], 40
    %v749 = vld [vmem:[%s748] sm:$0xff]
    %751 = vrot.lane.b32.xlu0 %v746, 32
    %v752 = vpop.permute.xlu0 %751
    %v753 = vsel %vm48, %v752, 0
    %755 = vmatprep.subr.mxu0 0.0
    %756 = vmatpush1.msra.mxu0 %v193
    %757 = vmatprep.subr.mxu0 0.0
    %758 = vmatpush1.msra.mxu0 %v194
    %759 = vmatprep.subr.mxu0 0.0
    %760 = vmatpush1.msra.mxu0 %v195
    %761 = vmatprep.subr.mxu0 0.0
    %762 = vmatpush1.msra.mxu0 %v196
    %763 = vmatprep.subr.mxu0 0.0
    %764 = vmatpush1.msra.mxu0 0.0
    %765 = vmatprep.subr.mxu0 0.0
    %766 = vmatpush1.msra.mxu0 0.0
    %767 = vmatprep.subr.mxu0 0.0
    %768 = vmatpush1.msra.mxu0 0.0
    %769 = vmatprep.subr.mxu0 0.0
    %770 = vmatpush1.msra.mxu0 0.0
    %771 = vmatprep.subr.mxu0 0.0
    %772 = vmatpush1.msra.mxu0 0.0
    %773 = vmatprep.subr.mxu0 0.0
    %774 = vmatpush1.msra.mxu0 0.0
    %775 = vmatprep.subr.mxu0 0.0
    %776 = vmatpush1.msra.mxu0 0.0
    %777 = vmatprep.subr.mxu0 0.0
    %778 = vmatpush1.msra.mxu0 0.0
    %779 = vmatprep.subr.mxu0 0.0
    %780 = vmatpush1.msra.mxu0 0.0
    %781 = vmatprep.subr.mxu0 0.0
    %782 = vmatpush1.msra.mxu0 0.0
    %783 = vmatprep.subr.mxu0 0.0
    %784 = vmatpush1.msra.mxu0 0.0
    %785 = vmatprep.subr.mxu0 0.0
    %786 = vmatpush1.msra.mxu0 0.0
    %787 = vmatprep.subr.mxu0 0.0
    %788 = vmatpush1.msra.mxu0 0.0
    %789 = vmatprep.subr.mxu0 0.0
    %790 = vmatpush1.msra.mxu0 0.0
    %791 = vmatprep.subr.mxu0 0.0
    %792 = vmatpush1.msra.mxu0 0.0
    %793 = vmatprep.subr.mxu0 0.0
    %794 = vmatpush1.msra.mxu0 0.0
    %795 = vmatprep.subr.mxu0 0.0
    %796 = vmatpush1.msra.mxu0 0.0
    %797 = vmatprep.subr.mxu0 0.0
    %798 = vmatpush1.msra.mxu0 0.0
    %799 = vmatprep.subr.mxu0 0.0
    %800 = vmatpush1.msra.mxu0 0.0
    %801 = vmatprep.subr.mxu0 0.0
    %802 = vmatpush1.msra.mxu0 0.0
    %803 = vmatprep.subr.mxu0 0.0
    %804 = vmatpush1.msra.mxu0 0.0
    %805 = vmatprep.subr.mxu0 0.0
    %806 = vmatpush1.msra.mxu0 0.0
    %807 = vmatprep.subr.mxu0 0.0
    %808 = vmatpush1.msra.mxu0 0.0
    %809 = vmatprep.subr.mxu0 0.0
    %810 = vmatpush1.msra.mxu0 0.0
    %811 = vmatprep.subr.mxu0 0.0
    %812 = vmatpush1.msra.mxu0 0.0
    %813 = vmatprep.subr.mxu0 0.0
    %814 = vmatpush1.msra.mxu0 0.0
    %815 = vmatprep.subr.mxu0 0.0
    %816 = vmatpush1.msra.mxu0 0.0
    %817 = vmatprep.subr.mxu0 0.0
    %818 = vmatpush1.msra.mxu0 0.0
    %819 = vmatprep.mubr.f32.mxu0 0.0
    %820 = vmatmul.mubr.f32.gmra.mrb[0].mxu0 %v753
    %v821 = vpop.f32.mrb[0].mxu0
    %v822 = vadd.f32 0.0, %v821
    %v823 = vpop.f32.mrb[0].mxu0
    %824 = vdwg.mxu0
    %v825 = vadd.f32 %v749, %v822
    %v826 = vtanh.pop %v825
    %v827 = vxor.u32 %v825, 2147483648
    %v828 = vmul.f32 %v827, 1.442695
    %v829 = vpow.pop %v828
    %v830 = vadd.f32 %v829, 1.0
    %v831 = vrcp.pop %v830
    %v832 = vmul.f32 1.0, %v831
    %v833 = vsel %vm191, %v826, %v832
    %v834 = vmul.f32 %v833, %v747
    %836 = vrot.lane.b32.xlu0 %v833, 64
    %v837 = vpop.permute.xlu0 %836
    %v839 = vmul.f32 %v833, %v837
    %841 = vrot.lane.b32.xlu0 %v839, 32
    %v842 = vpop.permute.xlu0 %841
    %v844 = vadd.f32 %v834, %v842
    %v845 = vtanh.pop %v844
    %847 = vrot.lane.b32.xlu0 %v845, 64
    %v848 = vpop.permute.xlu0 %847
    %v850 = vmul.f32 %v833, %v848
    %vm851 = vcmp.gt.s32.totalorder %v186, 5
    %v852 = vsel %vm851, 1, 0
    %853 = vset.pattern.permute.xlu0 0
    %854 = vperm.xlu0 %853, %v852
    %v855 = vpop.permute.xlu0 %854
    %vm856 = vcmp.eq.s32.totalorder %v855, 1
    %v857 = vsel %vm856, %v850, %v746
    %v858 = vsel %vm856, %v844, %v747
    %s859 = scalar_lea.vmem [#allocation2], 48
    %v860 = vld [vmem:[%s859] sm:$0xff]
    %862 = vrot.lane.b32.xlu0 %v857, 32
    %v863 = vpop.permute.xlu0 %862
    %v864 = vsel %vm48, %v863, 0
    %866 = vmatprep.subr.mxu0 0.0
    %867 = vmatpush1.msra.mxu0 %v193
    %868 = vmatprep.subr.mxu0 0.0
    %869 = vmatpush1.msra.mxu0 %v194
    %870 = vmatprep.subr.mxu0 0.0
    %871 = vmatpush1.msra.mxu0 %v195
    %872 = vmatprep.subr.mxu0 0.0
    %873 = vmatpush1.msra.mxu0 %v196
    %874 = vmatprep.subr.mxu0 0.0
    %875 = vmatpush1.msra.mxu0 0.0
    %876 = vmatprep.subr.mxu0 0.0
    %877 = vmatpush1.msra.mxu0 0.0
    %878 = vmatprep.subr.mxu0 0.0
    %879 = vmatpush1.msra.mxu0 0.0
    %880 = vmatprep.subr.mxu0 0.0
    %881 = vmatpush1.msra.mxu0 0.0
    %882 = vmatprep.subr.mxu0 0.0
    %883 = vmatpush1.msra.mxu0 0.0
    %884 = vmatprep.subr.mxu0 0.0
    %885 = vmatpush1.msra.mxu0 0.0
    %886 = vmatprep.subr.mxu0 0.0
    %887 = vmatpush1.msra.mxu0 0.0
    %888 = vmatprep.subr.mxu0 0.0
    %889 = vmatpush1.msra.mxu0 0.0
    %890 = vmatprep.subr.mxu0 0.0
    %891 = vmatpush1.msra.mxu0 0.0
    %892 = vmatprep.subr.mxu0 0.0
    %893 = vmatpush1.msra.mxu0 0.0
    %894 = vmatprep.subr.mxu0 0.0
    %895 = vmatpush1.msra.mxu0 0.0
    %896 = vmatprep.subr.mxu0 0.0
    %897 = vmatpush1.msra.mxu0 0.0
    %898 = vmatprep.subr.mxu0 0.0
    %899 = vmatpush1.msra.mxu0 0.0
    %900 = vmatprep.subr.mxu0 0.0
    %901 = vmatpush1.msra.mxu0 0.0
    %902 = vmatprep.subr.mxu0 0.0
    %903 = vmatpush1.msra.mxu0 0.0
    %904 = vmatprep.subr.mxu0 0.0
    %905 = vmatpush1.msra.mxu0 0.0
    %906 = vmatprep.subr.mxu0 0.0
    %907 = vmatpush1.msra.mxu0 0.0
    %908 = vmatprep.subr.mxu0 0.0
    %909 = vmatpush1.msra.mxu0 0.0
    %910 = vmatprep.subr.mxu0 0.0
    %911 = vmatpush1.msra.mxu0 0.0
    %912 = vmatprep.subr.mxu0 0.0
    %913 = vmatpush1.msra.mxu0 0.0
    %914 = vmatprep.subr.mxu0 0.0
    %915 = vmatpush1.msra.mxu0 0.0
    %916 = vmatprep.subr.mxu0 0.0
    %917 = vmatpush1.msra.mxu0 0.0
    %918 = vmatprep.subr.mxu0 0.0
    %919 = vmatpush1.msra.mxu0 0.0
    %920 = vmatprep.subr.mxu0 0.0
    %921 = vmatpush1.msra.mxu0 0.0
    %922 = vmatprep.subr.mxu0 0.0
    %923 = vmatpush1.msra.mxu0 0.0
    %924 = vmatprep.subr.mxu0 0.0
    %925 = vmatpush1.msra.mxu0 0.0
    %926 = vmatprep.subr.mxu0 0.0
    %927 = vmatpush1.msra.mxu0 0.0
    %928 = vmatprep.subr.mxu0 0.0
    %929 = vmatpush1.msra.mxu0 0.0
    %930 = vmatprep.mubr.f32.mxu0 0.0
    %931 = vmatmul.mubr.f32.gmra.mrb[0].mxu0 %v864
    %v932 = vpop.f32.mrb[0].mxu0
    %v933 = vadd.f32 0.0, %v932
    %v934 = vpop.f32.mrb[0].mxu0
    %935 = vdwg.mxu0
    %v936 = vadd.f32 %v860, %v933
    %v937 = vtanh.pop %v936
    %v938 = vxor.u32 %v936, 2147483648
    %v939 = vmul.f32 %v938, 1.442695
    %v940 = vpow.pop %v939
    %v941 = vadd.f32 %v940, 1.0
    %v942 = vrcp.pop %v941
    %v943 = vmul.f32 1.0, %v942
    %v944 = vsel %vm191, %v937, %v943
    %v945 = vmul.f32 %v944, %v858
    %947 = vrot.lane.b32.xlu0 %v944, 64
    %v948 = vpop.permute.xlu0 %947
    %v950 = vmul.f32 %v944, %v948
    %952 = vrot.lane.b32.xlu0 %v950, 32
    %v953 = vpop.permute.xlu0 %952
    %v955 = vadd.f32 %v945, %v953
    %v956 = vtanh.pop %v955
    %958 = vrot.lane.b32.xlu0 %v956, 64
    %v959 = vpop.permute.xlu0 %958
    %v961 = vmul.f32 %v944, %v959
    %vm962 = vcmp.gt.s32.totalorder %v186, 6
    %v963 = vsel %vm962, 1, 0
    %964 = vset.pattern.permute.xlu0 0
    %965 = vperm.xlu0 %964, %v963
    %v966 = vpop.permute.xlu0 %965
    %vm967 = vcmp.eq.s32.totalorder %v966, 1
    %v968 = vsel %vm967, %v961, %v857
    %v969 = vsel %vm967, %v955, %v858
    %s970 = scalar_lea.vmem [#allocation2], 56
    %v971 = vld [vmem:[%s970] sm:$0xff]
    %973 = vrot.lane.b32.xlu0 %v968, 32
    %v974 = vpop.permute.xlu0 %973
    %v975 = vsel %vm48, %v974, 0
    %977 = vmatprep.subr.mxu0 0.0
    %978 = vmatpush1.msra.mxu0 %v193
    %979 = vmatprep.subr.mxu0 0.0
    %980 = vmatpush1.msra.mxu0 %v194
    %981 = vmatprep.subr.mxu0 0.0
    %982 = vmatpush1.msra.mxu0 %v195
    %983 = vmatprep.subr.mxu0 0.0
    %984 = vmatpush1.msra.mxu0 %v196
    %985 = vmatprep.subr.mxu0 0.0
    %986 = vmatpush1.msra.mxu0 0.0
    %987 = vmatprep.subr.mxu0 0.0
    %988 = vmatpush1.msra.mxu0 0.0
    %989 = vmatprep.subr.mxu0 0.0
    %990 = vmatpush1.msra.mxu0 0.0
    %991 = vmatprep.subr.mxu0 0.0
    %992 = vmatpush1.msra.mxu0 0.0
    %993 = vmatprep.subr.mxu0 0.0
    %994 = vmatpush1.msra.mxu0 0.0
    %995 = vmatprep.subr.mxu0 0.0
    %996 = vmatpush1.msra.mxu0 0.0
    %997 = vmatprep.subr.mxu0 0.0
    %998 = vmatpush1.msra.mxu0 0.0
    %999 = vmatprep.subr.mxu0 0.0
    %1000 = vmatpush1.msra.mxu0 0.0
    %1001 = vmatprep.subr.mxu0 0.0
    %1002 = vmatpush1.msra.mxu0 0.0
    %1003 = vmatprep.subr.mxu0 0.0
    %1004 = vmatpush1.msra.mxu0 0.0
    %1005 = vmatprep.subr.mxu0 0.0
    %1006 = vmatpush1.msra.mxu0 0.0
    %1007 = vmatprep.subr.mxu0 0.0
    %1008 = vmatpush1.msra.mxu0 0.0
    %1009 = vmatprep.subr.mxu0 0.0
    %1010 = vmatpush1.msra.mxu0 0.0
    %1011 = vmatprep.subr.mxu0 0.0
    %1012 = vmatpush1.msra.mxu0 0.0
    %1013 = vmatprep.subr.mxu0 0.0
    %1014 = vmatpush1.msra.mxu0 0.0
    %1015 = vmatprep.subr.mxu0 0.0
    %1016 = vmatpush1.msra.mxu0 0.0
    %1017 = vmatprep.subr.mxu0 0.0
    %1018 = vmatpush1.msra.mxu0 0.0
    %1019 = vmatprep.subr.mxu0 0.0
    %1020 = vmatpush1.msra.mxu0 0.0
    %1021 = vmatprep.subr.mxu0 0.0
    %1022 = vmatpush1.msra.mxu0 0.0
    %1023 = vmatprep.subr.mxu0 0.0
    %1024 = vmatpush1.msra.mxu0 0.0
    %1025 = vmatprep.subr.mxu0 0.0
    %1026 = vmatpush1.msra.mxu0 0.0
    %1027 = vmatprep.subr.mxu0 0.0
    %1028 = vmatpush1.msra.mxu0 0.0
    %1029 = vmatprep.subr.mxu0 0.0
    %1030 = vmatpush1.msra.mxu0 0.0
    %1031 = vmatprep.subr.mxu0 0.0
    %1032 = vmatpush1.msra.mxu0 0.0
    %1033 = vmatprep.subr.mxu0 0.0
    %1034 = vmatpush1.msra.mxu0 0.0
    %1035 = vmatprep.subr.mxu0 0.0
    %1036 = vmatpush1.msra.mxu0 0.0
    %1037 = vmatprep.subr.mxu0 0.0
    %1038 = vmatpush1.msra.mxu0 0.0
    %1039 = vmatprep.subr.mxu0 0.0
    %1040 = vmatpush1.msra.mxu0 0.0
    %1041 = vmatprep.mubr.f32.mxu0 0.0
    %1042 = vmatmul.mubr.f32.gmra.mrb[0].mxu0 %v975
    %v1043 = vpop.f32.mrb[0].mxu0
    %v1044 = vadd.f32 0.0, %v1043
    %v1045 = vpop.f32.mrb[0].mxu0
    %1046 = vdwg.mxu0
    %v1047 = vadd.f32 %v971, %v1044
    %v1048 = vtanh.pop %v1047
    %v1049 = vxor.u32 %v1047, 2147483648
    %v1050 = vmul.f32 %v1049, 1.442695
    %v1051 = vpow.pop %v1050
    %v1052 = vadd.f32 %v1051, 1.0
    %v1053 = vrcp.pop %v1052
    %v1054 = vmul.f32 1.0, %v1053
    %v1055 = vsel %vm191, %v1048, %v1054
    %v1056 = vmul.f32 %v1055, %v969
    %1058 = vrot.lane.b32.xlu0 %v1055, 64
    %v1059 = vpop.permute.xlu0 %1058
    %v1061 = vmul.f32 %v1055, %v1059
    %1063 = vrot.lane.b32.xlu0 %v1061, 32
    %v1064 = vpop.permute.xlu0 %1063
    %v1066 = vadd.f32 %v1056, %v1064
    %vm1067 = vcmp.gt.s32.totalorder %v186, 7
    %v1068 = vsel %vm1067, 1, 0
    %1069 = vset.pattern.permute.xlu0 0
    %1070 = vperm.xlu0 %1069, %v1068
    %v1071 = vpop.permute.xlu0 %1070
    %vm1072 = vcmp.eq.s32.totalorder %v1071, 1
    %v1073 = vsel %vm1072, %v1066, %v969
    %1075 = vrot.lane.b32.xlu0 %v1073, 96
    %v1076 = vpop.permute.xlu0 %1075
    %1078 = vst.msk [vmem:[#allocation3] sm:$0xff] %vm48, %v1076
    // Predicated region
    $region22: #{text_processor_forward.1} parent=1 // pred_check
      _
    $region23: #{text_processor_forward.1} parent=1 // pred_check_branch
      %1080 = sbr.rel (0) target = $region25
    $region24: #{text_processor_forward.1} parent=1 // pred_region
      %s1082 = ssub.s32 128, 128
      %1083 = vsyncadd [#allocation4], %s1082
      %s1085 = sshll.u32 [#allocation3], 4
      %s1086 = int_to_ptr.vmem [resolvable:$true] %s1085
      %1088 = dma.vmem_to_hbm [thread:$0]  %s1086, 128, %s5, [#allocation4]
    $region25: #{text_processor_forward.1} parent=1 // pred_fallthru
      _
    // Predicated region
    $region26: #{text_processor_forward.1} parent=1 // pred_check
      _
    $region27: #{text_processor_forward.1} parent=1 // pred_check_branch
      %1090 = sbr.rel (0) target = $region29
    $region28: #{text_processor_forward.1} parent=1 // pred_region
      %1091 = dma.done [#allocation4], 128
    $region29: #{text_processor_forward.1} parent=1 // pred_fallthru
      _
    %1092 = vsyncpa [#allocation4], 1

</llo_original>
